<compile_context>
chip_gen: v7x
topology: tpu7x:2x2x1
jax: 0.10.0
libtpu: 0.0.40
codegen_flags: <defaults>
</compile_context>

<pallas_src>
import functools
import math

import jax
import jax.numpy as jnp
from jax import lax
from jax.experimental import pallas as pl
from jax.experimental.pallas import tpu as pltpu

_VMEM_LIMIT = 48 * 1024 * 1024  # safe on v5e/v6e (128 MiB) and v7x (64 MiB)

# ---------------------------------------------------------------------------
# Helpers
# ---------------------------------------------------------------------------

def _pick_tile(full, target, align):
    """Largest tile <= target that is a multiple of `align` and divides `full`;
    falls back to `full` (block == full dim is always legal)."""
    if full <= target:
        return full
    t = (min(target, full) // align) * align
    while t >= align:
        if full % t == 0:
            return t
        t -= align
    return full


_CONTRACT_LAST = (((1,), (1,)), ((), ()))   # contract last dim of both operands


# ---------------------------------------------------------------------------
# Fused Q/K/V projection kernel (one read of X, three accumulators)
# ---------------------------------------------------------------------------

def _qkv_proj_kernel(x_ref, w_ref, b_ref, o_ref, acc_q, acc_k, acc_v, *, mxu_dtype):
    k_idx = pl.program_id(2)
    accs = (acc_q, acc_k, acc_v)

    @pl.when(k_idx == 0)
    def _():
        for acc in accs:
            acc[...] = jnp.zeros_like(acc)

    x = x_ref[...].astype(mxu_dtype)                      # (tm, tk)
    for p in range(3):
        w = w_ref[p].astype(mxu_dtype)                    # (tn, tk)
        accs[p][...] += lax.dot_general(
            x, w, _CONTRACT_LAST, preferred_element_type=jnp.float32)

    @pl.when(k_idx == pl.num_programs(2) - 1)
    def _():
        for p in range(3):
            o_ref[p] = (accs[p][...] + b_ref[p]).astype(o_ref.dtype)


def pallas_qkv_proj(x, w3, b3, *, mxu_dtype=jnp.float32, tm=256, tn=256, tk=512):
    """x: (M, K), w3: (3, Nh, K), b3: (3, 1, Nh) -> (3, M, Nh) f32."""
    M, K = x.shape
    Nh = w3.shape[1]
    tm = _pick_tile(M, tm, 8)
    tn = _pick_tile(Nh, tn, 128)
    tk = _pick_tile(K, tk, 128)
    grid = (M // tm, Nh // tn, K // tk)
    kernel = functools.partial(_qkv_proj_kernel, mxu_dtype=mxu_dtype)
    return pl.pallas_call(
        kernel,
        out_shape=jax.ShapeDtypeStruct((3, M, Nh), jnp.float32),
        grid=grid,
        in_specs=[
            pl.BlockSpec((tm, tk), lambda i, j, k: (i, k)),
            pl.BlockSpec((3, tn, tk), lambda i, j, k: (0, j, k)),
            pl.BlockSpec((3, 1, tn), lambda i, j, k: (0, 0, j)),
        ],
        out_specs=pl.BlockSpec((3, tm, tn), lambda i, j, k: (0, i, j)),
        scratch_shapes=[pltpu.VMEM((tm, tn), jnp.float32)] * 3,
        compiler_params=pltpu.CompilerParams(
            dimension_semantics=("parallel", "parallel", "arbitrary"),
            vmem_limit_bytes=_VMEM_LIMIT),
        cost_estimate=pl.CostEstimate(
            flops=2 * M * K * 3 * Nh,
            transcendentals=0,
            bytes_accessed=4 * (M * K + 3 * Nh * K + 3 * M * Nh + 3 * Nh)),
    )(x, w3, b3)


# ---------------------------------------------------------------------------
# Generic tiled linear (used for the output projection `ff`)
# ---------------------------------------------------------------------------

def _linear_kernel(x_ref, w_ref, b_ref, o_ref, acc_ref, *, mxu_dtype):
    k_idx = pl.program_id(2)

    @pl.when(k_idx == 0)
    def _():
        acc_ref[...] = jnp.zeros_like(acc_ref)

    acc_ref[...] += lax.dot_general(
        x_ref[...].astype(mxu_dtype), w_ref[...].astype(mxu_dtype),
        _CONTRACT_LAST, preferred_element_type=jnp.float32)

    @pl.when(k_idx == pl.num_programs(2) - 1)
    def _():
        o_ref[...] = (acc_ref[...] + b_ref[...]).astype(o_ref.dtype)


def pallas_linear(x, w, b, *, mxu_dtype=jnp.float32, tm=256, tn=256, tk=512):
    """x: (M, K), w: (N, K) torch nn.Linear layout, b: (N,) -> (M, N) f32."""
    M, K = x.shape
    N = w.shape[0]
    tm = _pick_tile(M, tm, 8)
    tn = _pick_tile(N, tn, 128)
    tk = _pick_tile(K, tk, 128)
    grid = (M // tm, N // tn, K // tk)
    kernel = functools.partial(_linear_kernel, mxu_dtype=mxu_dtype)
    return pl.pallas_call(
        kernel,
        out_shape=jax.ShapeDtypeStruct((M, N), jnp.float32),
        grid=grid,
        in_specs=[
            pl.BlockSpec((tm, tk), lambda i, j, k: (i, k)),
            pl.BlockSpec((tn, tk), lambda i, j, k: (j, k)),
            pl.BlockSpec((1, tn), lambda i, j, k: (0, j)),
        ],
        out_specs=pl.BlockSpec((tm, tn), lambda i, j, k: (i, j)),
        scratch_shapes=[pltpu.VMEM((tm, tn), jnp.float32)],
        compiler_params=pltpu.CompilerParams(
            dimension_semantics=("parallel", "parallel", "arbitrary"),
            vmem_limit_bytes=_VMEM_LIMIT),
        cost_estimate=pl.CostEstimate(
            flops=2 * M * N * K,
            transcendentals=0,
            bytes_accessed=4 * (M * K + N * K + M * N + N)),
    )(x, w.astype(jnp.float32), b.reshape(1, N))


# ---------------------------------------------------------------------------
# Softmax attention kernel: grid = (batch, query tile), all heads per step.
# Q/K/V read straight out of the fused (3, B, S, H*Dh) tensor via index maps.
# ---------------------------------------------------------------------------

def _attn_kernel(q_ref, k_ref, v_ref, bias_ref, o_ref, *, num_head, head_dim,
                 scale, mxu_dtype):
    q = q_ref[0, 0]          # (tq, H*Dh)
    k = k_ref[0, 0]          # (S,  H*Dh)
    v = v_ref[0, 0]          # (S,  H*Dh)
    bias = bias_ref[0]       # (1, S)  precomputed -1e6 * (1 - mask)

    outs = []
    for h in range(num_head):
        lo = h * head_dim
        hi = lo + head_dim
        qh = q[:, lo:hi].astype(mxu_dtype)
        kh = k[:, lo:hi].astype(mxu_dtype)
        vh = v[:, lo:hi].astype(mxu_dtype)

        scores = lax.dot_general(qh, kh, _CONTRACT_LAST,
                                 preferred_element_type=jnp.float32)
        scores = scores * scale + bias                      # (tq, S)
        m = jnp.max(scores, axis=-1, keepdims=True)
        e = jnp.exp(scores - m)
        # Note: a fully-masked row gives a uniform softmax over -1e6 scores,
        # matching the PyTorch reference semantics.
        p = e * pl.reciprocal(jnp.sum(e, axis=-1, keepdims=True), approx=True)
        # attention_dropout = 0.0 -> identity (eval semantics)
        outs.append(lax.dot_general(p.astype(mxu_dtype), vh,
                                    (((1,), (0,)), ((), ())),
                                    preferred_element_type=jnp.float32))

    # single lane-dense (tq, H*Dh) store
    o_ref[0] = jnp.concatenate(outs, axis=-1).astype(o_ref.dtype)


def pallas_softmax_attention(qkv, mask_bias, *, num_head, head_dim,
                             mxu_dtype=jnp.float32, tq=256):
    """qkv: (3, B, S, H*Dh) f32; mask_bias: (B, 1, S) f32 -> (B, S, H*Dh) f32."""
    _, B, S, Nh = qkv.shape
    tq = _pick_tile(S, tq, 8)
    grid = (B, S // tq)
    scale = 1.0 / math.sqrt(head_dim)
    kernel = functools.partial(_attn_kernel, num_head=num_head,
                               head_dim=head_dim, scale=scale,
                               mxu_dtype=mxu_dtype)
    # TODO(synk): for very long S, tile the key dim too (flash-style online
    # softmax) instead of keeping the full K/V slab resident per step.
    return pl.pallas_call(
        kernel,
        out_shape=jax.ShapeDtypeStruct((B, S, Nh), jnp.float32),
        grid=grid,
        in_specs=[
            pl.BlockSpec((1, 1, tq, Nh), lambda b, qi: (0, b, qi, 0)),  # Q tile
            pl.BlockSpec((1, 1, S, Nh), lambda b, qi: (1, b, 0, 0)),    # K (full S)
            pl.BlockSpec((1, 1, S, Nh), lambda b, qi: (2, b, 0, 0)),    # V (full S)
            pl.BlockSpec((1, 1, S), lambda b, qi: (b, 0, 0)),           # mask bias
        ],
        out_specs=pl.BlockSpec((1, tq, Nh), lambda b, qi: (b, qi, 0)),
        compiler_params=pltpu.CompilerParams(
            dimension_semantics=("parallel", "parallel"),
            vmem_limit_bytes=_VMEM_LIMIT),
        cost_estimate=pl.CostEstimate(
            flops=4 * B * num_head * S * S * head_dim,
            transcendentals=B * num_head * S * S,
            bytes_accessed=4 * (4 * B * S * Nh + B * S)),
    )(qkv, qkv, qkv, mask_bias)


# ---------------------------------------------------------------------------
# Module wrapper
# ---------------------------------------------------------------------------

def init_attention_params(key, dim, num_head, head_dim):
    hd = num_head * head_dim
    keys = jax.random.split(key, 8)
    s_in = 1.0 / math.sqrt(dim)
    s_out = 1.0 / math.sqrt(hd)
    return {
        "W_q_w": jax.random.uniform(keys[0], (hd, dim), jnp.float32, -s_in, s_in),
        "W_q_b": jax.random.uniform(keys[1], (hd,), jnp.float32, -s_in, s_in),
        "W_k_w": jax.random.uniform(keys[2], (hd, dim), jnp.float32, -s_in, s_in),
        "W_k_b": jax.random.uniform(keys[3], (hd,), jnp.float32, -s_in, s_in),
        "W_v_w": jax.random.uniform(keys[4], (hd, dim), jnp.float32, -s_in, s_in),
        "W_v_b": jax.random.uniform(keys[5], (hd,), jnp.float32, -s_in, s_in),
        "ff_w": jax.random.uniform(keys[6], (dim, hd), jnp.float32, -s_out, s_out),
        "ff_b": jax.random.uniform(keys[7], (dim,), jnp.float32, -s_out, s_out),
    }


def attention_forward(params, X, mask, num_head, head_dim, mxu_dtype=jnp.float32):
    B, S, dim = X.shape
    Nh = num_head * head_dim
    x2d = X.reshape(B * S, dim)

    # Fused Q/K/V projection: one kernel, one read of X.
    w3 = jnp.stack([params["W_q_w"], params["W_k_w"], params["W_v_w"]])      # (3,Nh,dim)
    b3 = jnp.stack([params["W_q_b"], params["W_k_b"], params["W_v_b"]]
                   ).reshape(3, 1, Nh)
    qkv = pallas_qkv_proj(x2d, w3, b3, mxu_dtype=mxu_dtype)                  # (3,B*S,Nh)
    qkv = qkv.reshape(3, B, S, Nh)                                           # free reshape

    # Mask bias precomputed once (dot = QK^T*scale + bias).
    mask_bias = (-1.0e6 * (1.0 - mask)).reshape(B, 1, S).astype(jnp.float32)

    attn_out = pallas_softmax_attention(qkv, mask_bias, num_head=num_head,
                                        head_dim=head_dim,
                                        mxu_dtype=mxu_dtype)                 # (B,S,Nh)

    out = pallas_linear(attn_out.reshape(B * S, Nh), params["ff_w"],
                        params["ff_b"], mxu_dtype=mxu_dtype)
    return out.reshape(B, S, dim)


# Pure-JAX reference (same math as the PyTorch module) for a sanity check.
def attention_forward_ref(params, X, mask, num_head, head_dim):
    B, S, dim = X.shape
    q = X @ params["W_q_w"].T + params["W_q_b"]
    k = X @ params["W_k_w"].T + params["W_k_b"]
    v = X @ params["W_v_w"].T + params["W_v_b"]

    def split_heads(x):
        return x.reshape(B, S, num_head, head_dim).transpose(0, 2, 1, 3)

    Q, K, V = split_heads(q), split_heads(k), split_heads(v)
    dot = jnp.einsum("bhsd,bhtd->bhst", Q, K) / math.sqrt(head_dim)
    dot = dot - 1.0e6 * (1.0 - mask[:, None, None, :])
    attn = jax.nn.softmax(dot, axis=-1)
    X_attn = jnp.einsum("bhst,bhtd->bhsd", attn, V)
    combined = X_attn.transpose(0, 2, 1, 3).reshape(B, S, num_head * head_dim)
    return combined @ params["ff_w"].T + params["ff_b"]


# TODO(synk): elliptical / over_layers / other attn_type branches of the original
# module are not implemented; only the 'softmax' (non-elliptical) path is kernelized.

if __name__ == "__main__":
    B, S = 2, 8
    dim, num_head, head_dim = 32, 2, 16   # num_head * head_dim == transformer_dim

    key = jax.random.PRNGKey(0)
    k_params, k_x = jax.random.split(key)
    params = init_attention_params(k_params, dim, num_head, head_dim)

    X = jax.random.normal(k_x, (B, S, dim), dtype=jnp.float32)
    # deterministic mask: batch 0 full, batch 1 has last 2 positions padded
    lengths = jnp.array([S, S - 2])
    mask = (jnp.arange(S)[None, :] < lengths[:, None]).astype(jnp.float32)

    fwd = jax.jit(attention_forward,
                  static_argnames=("num_head", "head_dim", "mxu_dtype"))

    # f32 MXU path: tight-ish check (approx reciprocal in softmax -> loose tol).
    out = jax.block_until_ready(
        fwd(params, X, mask, num_head=num_head, head_dim=head_dim))
    ref = attention_forward_ref(params, X, mask, num_head, head_dim)
    assert out.shape == (B, S, dim)
    err = float(jnp.max(jnp.abs(out - ref)))
    assert jnp.allclose(out, ref, rtol=2e-2, atol=2e-2), err

    # bf16 MXU operands with f32 accumulation (v6e/v7x recommendation).
    out_bf16 = jax.block_until_ready(
        fwd(params, X, mask, num_head=num_head, head_dim=head_dim,
            mxu_dtype=jnp.bfloat16))
    assert out_bf16.shape == (B, S, dim)
    assert bool(jnp.all(jnp.isfinite(out_bf16)))

    print("KERNEL_OK")
</pallas_src>

<mosaic_0001>
module attributes {stable_mosaic.version = 11 : i64} {
  func.func @_qkv_proj_kernel(%arg0: i32, %arg1: i32, %arg2: i32, %arg3: memref<16x32xf32, #tpu.memory_space<vmem>>, %arg4: memref<3x32x32xf32, #tpu.memory_space<vmem>>, %arg5: memref<3x1x32xf32, #tpu.memory_space<vmem>>, %arg6: memref<3x16x32xf32, #tpu.memory_space<vmem>>, %arg7: memref<16x32xf32, #tpu.memory_space<vmem>>, %arg8: memref<16x32xf32, #tpu.memory_space<vmem>>, %arg9: memref<16x32xf32, #tpu.memory_space<vmem>>) attributes {dimension_semantics = [#tpu.dimension_semantics<parallel>, #tpu.dimension_semantics<parallel>, #tpu.dimension_semantics<arbitrary>], iteration_bounds = array<i64: 1, 1, 1>, scalar_prefetch = 0 : i64, scratch_operands = 3 : i64, tpu.core_type = #tpu.core_type<tc>, window_params = [{transform_indices = @transform_0, window_bounds = array<i64: 16, 32>}, {transform_indices = @transform_1, window_bounds = array<i64: 3, 32, 32>}, {transform_indices = @transform_2, window_bounds = array<i64: 3, 1, 32>}, {transform_indices = @transform_3, window_bounds = array<i64: 3, 16, 32>}]} {
    %c0_i32 = arith.constant 0 : i32
    %0 = arith.cmpi eq, %arg2, %c0_i32 : i32
    %1 = arith.extui %0 : i1 to i32
    %c0_i32_0 = arith.constant 0 : i32
    %2 = arith.cmpi ne, %1, %c0_i32_0 : i32
    scf.if %2 {
      %cst_25 = arith.constant 0.000000e+00 : f32
      %25 = vector.broadcast %cst_25 : f32 to vector<16x32xf32>
      %c0_26 = arith.constant 0 : index
      %c0_27 = arith.constant 0 : index
      %26 = vector.load %arg7[%c0_26, %c0_27] : memref<16x32xf32, #tpu.memory_space<vmem>>, vector<16x32xf32>
      tpu.vector_store %arg7[%c0_26, %c0_27], %25 {strides = array<i32>} : memref<16x32xf32, #tpu.memory_space<vmem>>, vector<16x32xf32>,
      %cst_28 = arith.constant 0.000000e+00 : f32
      %27 = vector.broadcast %cst_28 : f32 to vector<16x32xf32>
      %c0_29 = arith.constant 0 : index
      %c0_30 = arith.constant 0 : index
      %28 = vector.load %arg8[%c0_29, %c0_30] : memref<16x32xf32, #tpu.memory_space<vmem>>, vector<16x32xf32>
      tpu.vector_store %arg8[%c0_29, %c0_30], %27 {strides = array<i32>} : memref<16x32xf32, #tpu.memory_space<vmem>>, vector<16x32xf32>,
      %cst_31 = arith.constant 0.000000e+00 : f32
      %29 = vector.broadcast %cst_31 : f32 to vector<16x32xf32>
      %c0_32 = arith.constant 0 : index
      %c0_33 = arith.constant 0 : index
      %30 = vector.load %arg9[%c0_32, %c0_33] : memref<16x32xf32, #tpu.memory_space<vmem>>, vector<16x32xf32>
      tpu.vector_store %arg9[%c0_32, %c0_33], %29 {strides = array<i32>} : memref<16x32xf32, #tpu.memory_space<vmem>>, vector<16x32xf32>,
    } else {
    }
    %c0 = arith.constant 0 : index
    %c0_1 = arith.constant 0 : index
    %3 = vector.load %arg3[%c0, %c0_1] : memref<16x32xf32, #tpu.memory_space<vmem>>, vector<16x32xf32>
    %c0_2 = arith.constant 0 : index
    %c0_3 = arith.constant 0 : index
    %c0_4 = arith.constant 0 : index
    %4 = vector.load %arg4[%c0_2, %c0_3, %c0_4] : memref<3x32x32xf32, #tpu.memory_space<vmem>>, vector<1x32x32xf32>
    %5 = vector.shape_cast %4 : vector<1x32x32xf32> to vector<32x32xf32>
    %c0_5 = arith.constant 0 : index
    %c0_6 = arith.constant 0 : index
    %6 = vector.load %arg7[%c0_5, %c0_6] : memref<16x32xf32, #tpu.memory_space<vmem>>, vector<16x32xf32>
    %cst = arith.constant dense<0.000000e+00> : vector<16x32xf32>
    %7 = tpu.matmul %3, %5, %cst {dimension_numbers = #tpu.dot_dimension_numbers<[1], [1], [0], [0], [0, 0, 1, 0], [], []>} : vector<16x32xf32>, vector<32x32xf32>, vector<16x32xf32> -> vector<16x32xf32>
    %8 = arith.addf %6, %7 : vector<16x32xf32>
    %c0_7 = arith.constant 0 : index
    %c0_8 = arith.constant 0 : index
    %9 = vector.load %arg7[%c0_7, %c0_8] : memref<16x32xf32, #tpu.memory_space<vmem>>, vector<16x32xf32>
    tpu.vector_store %arg7[%c0_7, %c0_8], %8 {strides = array<i32>} : memref<16x32xf32, #tpu.memory_space<vmem>>, vector<16x32xf32>,
    %c1 = arith.constant 1 : index
    %c0_9 = arith.constant 0 : index
    %c0_10 = arith.constant 0 : index
    %10 = vector.load %arg4[%c1, %c0_9, %c0_10] : memref<3x32x32xf32, #tpu.memory_space<vmem>>, vector<1x32x32xf32>
    %11 = vector.shape_cast %10 : vector<1x32x32xf32> to vector<32x32xf32>
    %c0_11 = arith.constant 0 : index
    %c0_12 = arith.constant 0 : index
    %12 = vector.load %arg8[%c0_11, %c0_12] : memref<16x32xf32, #tpu.memory_space<vmem>>, vector<16x32xf32>
    %cst_13 = arith.constant dense<0.000000e+00> : vector<16x32xf32>
    %13 = tpu.matmul %3, %11, %cst_13 {dimension_numbers = #tpu.dot_dimension_numbers<[1], [1], [0], [0], [0, 0, 1, 0], [], []>} : vector<16x32xf32>, vector<32x32xf32>, vector<16x32xf32> -> vector<16x32xf32>
    %14 = arith.addf %12, %13 : vector<16x32xf32>
    %c0_14 = arith.constant 0 : index
    %c0_15 = arith.constant 0 : index
    %15 = vector.load %arg8[%c0_14, %c0_15] : memref<16x32xf32, #tpu.memory_space<vmem>>, vector<16x32xf32>
    tpu.vector_store %arg8[%c0_14, %c0_15], %14 {strides = array<i32>} : memref<16x32xf32, #tpu.memory_space<vmem>>, vector<16x32xf32>,
    %c2 = arith.constant 2 : index
    %c0_16 = arith.constant 0 : index
    %c0_17 = arith.constant 0 : index
    %16 = vector.load %arg4[%c2, %c0_16, %c0_17] : memref<3x32x32xf32, #tpu.memory_space<vmem>>, vector<1x32x32xf32>
    %17 = vector.shape_cast %16 : vector<1x32x32xf32> to vector<32x32xf32>
    %c0_18 = arith.constant 0 : index
    %c0_19 = arith.constant 0 : index
    %18 = vector.load %arg9[%c0_18, %c0_19] : memref<16x32xf32, #tpu.memory_space<vmem>>, vector<16x32xf32>
    %cst_20 = arith.constant dense<0.000000e+00> : vector<16x32xf32>
    %19 = tpu.matmul %3, %17, %cst_20 {dimension_numbers = #tpu.dot_dimension_numbers<[1], [1], [0], [0], [0, 0, 1, 0], [], []>} : vector<16x32xf32>, vector<32x32xf32>, vector<16x32xf32> -> vector<16x32xf32>
    %20 = arith.addf %18, %19 : vector<16x32xf32>
    %c0_21 = arith.constant 0 : index
    %c0_22 = arith.constant 0 : index
    %21 = vector.load %arg9[%c0_21, %c0_22] : memref<16x32xf32, #tpu.memory_space<vmem>>, vector<16x32xf32>
    tpu.vector_store %arg9[%c0_21, %c0_22], %20 {strides = array<i32>} : memref<16x32xf32, #tpu.memory_space<vmem>>, vector<16x32xf32>,
    %c0_i32_23 = arith.constant 0 : i32
    %22 = arith.cmpi eq, %arg2, %c0_i32_23 : i32
    %23 = arith.extui %22 : i1 to i32
    %c0_i32_24 = arith.constant 0 : i32
    %24 = arith.cmpi ne, %23, %c0_i32_24 : i32
    scf.if %24 {
      %c0_25 = arith.constant 0 : index
      %c0_26 = arith.constant 0 : index
      %25 = vector.load %arg7[%c0_25, %c0_26] : memref<16x32xf32, #tpu.memory_space<vmem>>, vector<16x32xf32>
      %c0_27 = arith.constant 0 : index
      %c0_28 = arith.constant 0 : index
      %c0_29 = arith.constant 0 : index
      %26 = vector.load %arg5[%c0_27, %c0_28, %c0_29] : memref<3x1x32xf32, #tpu.memory_space<vmem>>, vector<1x1x32xf32>
      %27 = vector.shape_cast %26 : vector<1x1x32xf32> to vector<1x32xf32>
      %28 = vector.broadcast %27 : vector<1x32xf32> to vector<16x32xf32>
      %29 = arith.addf %25, %28 : vector<16x32xf32>
      %c0_30 = arith.constant 0 : index
      %c0_31 = arith.constant 0 : index
      %c0_32 = arith.constant 0 : index
      %30 = vector.load %arg6[%c0_30, %c0_31, %c0_32] : memref<3x16x32xf32, #tpu.memory_space<vmem>>, vector<1x16x32xf32>
      %31 = vector.shape_cast %30 : vector<1x16x32xf32> to vector<16x32xf32>
      %32 = vector.shape_cast %29 : vector<16x32xf32> to vector<1x16x32xf32>
      tpu.vector_store %arg6[%c0_30, %c0_31, %c0_32], %32 {strides = array<i32>} : memref<3x16x32xf32, #tpu.memory_space<vmem>>, vector<1x16x32xf32>,
      %c0_33 = arith.constant 0 : index
      %c0_34 = arith.constant 0 : index
      %33 = vector.load %arg8[%c0_33, %c0_34] : memref<16x32xf32, #tpu.memory_space<vmem>>, vector<16x32xf32>
      %c1_35 = arith.constant 1 : index
      %c0_36 = arith.constant 0 : index
      %c0_37 = arith.constant 0 : index
      %34 = vector.load %arg5[%c1_35, %c0_36, %c0_37] : memref<3x1x32xf32, #tpu.memory_space<vmem>>, vector<1x1x32xf32>
      %35 = vector.shape_cast %34 : vector<1x1x32xf32> to vector<1x32xf32>
      %36 = vector.broadcast %35 : vector<1x32xf32> to vector<16x32xf32>
      %37 = arith.addf %33, %36 : vector<16x32xf32>
      %c1_38 = arith.constant 1 : index
      %c0_39 = arith.constant 0 : index
      %c0_40 = arith.constant 0 : index
      %38 = vector.load %arg6[%c1_38, %c0_39, %c0_40] : memref<3x16x32xf32, #tpu.memory_space<vmem>>, vector<1x16x32xf32>
      %39 = vector.shape_cast %38 : vector<1x16x32xf32> to vector<16x32xf32>
      %40 = vector.shape_cast %37 : vector<16x32xf32> to vector<1x16x32xf32>
      tpu.vector_store %arg6[%c1_38, %c0_39, %c0_40], %40 {strides = array<i32>} : memref<3x16x32xf32, #tpu.memory_space<vmem>>, vector<1x16x32xf32>,
      %c0_41 = arith.constant 0 : index
      %c0_42 = arith.constant 0 : index
      %41 = vector.load %arg9[%c0_41, %c0_42] : memref<16x32xf32, #tpu.memory_space<vmem>>, vector<16x32xf32>
      %c2_43 = arith.constant 2 : index
      %c0_44 = arith.constant 0 : index
      %c0_45 = arith.constant 0 : index
      %42 = vector.load %arg5[%c2_43, %c0_44, %c0_45] : memref<3x1x32xf32, #tpu.memory_space<vmem>>, vector<1x1x32xf32>
      %43 = vector.shape_cast %42 : vector<1x1x32xf32> to vector<1x32xf32>
      %44 = vector.broadcast %43 : vector<1x32xf32> to vector<16x32xf32>
      %45 = arith.addf %41, %44 : vector<16x32xf32>
      %c2_46 = arith.constant 2 : index
      %c0_47 = arith.constant 0 : index
      %c0_48 = arith.constant 0 : index
      %46 = vector.load %arg6[%c2_46, %c0_47, %c0_48] : memref<3x16x32xf32, #tpu.memory_space<vmem>>, vector<1x16x32xf32>
      %47 = vector.shape_cast %46 : vector<1x16x32xf32> to vector<16x32xf32>
      %48 = vector.shape_cast %45 : vector<16x32xf32> to vector<1x16x32xf32>
      tpu.vector_store %arg6[%c2_46, %c0_47, %c0_48], %48 {strides = array<i32>} : memref<3x16x32xf32, #tpu.memory_space<vmem>>, vector<1x16x32xf32>,
    } else {
    }
    return
  }
  func.func @transform_0(%arg0: i32, %arg1: i32, %arg2: i32) -> (i32, i32) {
    %c0_i32 = arith.constant 0 : i32
    return %arg0, %arg2 : i32, i32
  }
  func.func @transform_1(%arg0: i32, %arg1: i32, %arg2: i32) -> (i32, i32, i32) {
    %c0_i32 = arith.constant 0 : i32
    %c0_i32_0 = arith.constant 0 : i32
    return %c0_i32, %arg1, %arg2 : i32, i32, i32
  }
  func.func @transform_2(%arg0: i32, %arg1: i32, %arg2: i32) -> (i32, i32, i32) {
    %c0_i32 = arith.constant 0 : i32
    %c0_i32_0 = arith.constant 0 : i32
    %c0_i32_1 = arith.constant 0 : i32
    return %c0_i32, %c0_i32_0, %arg1 : i32, i32, i32
  }
  func.func @transform_3(%arg0: i32, %arg1: i32, %arg2: i32) -> (i32, i32, i32) {
    %c0_i32 = arith.constant 0 : i32
    %c0_i32_0 = arith.constant 0 : i32
    return %c0_i32, %arg0, %arg1 : i32, i32, i32
  }
}

module attributes {stable_mosaic.version = 11 : i64} {
  func.func @_attn_kernel(%arg0: i32, %arg1: i32, %arg2: memref<1x1x8x32xf32, #tpu.memory_space<vmem>>, %arg3: memref<1x1x8x32xf32, #tpu.memory_space<vmem>>, %arg4: memref<1x1x8x32xf32, #tpu.memory_space<vmem>>, %arg5: memref<1x1x8xf32, #tpu.memory_space<vmem>>, %arg6: memref<1x8x32xf32, #tpu.memory_space<vmem>>) attributes {dimension_semantics = [#tpu.dimension_semantics<parallel>, #tpu.dimension_semantics<parallel>], iteration_bounds = array<i64: 2, 1>, scalar_prefetch = 0 : i64, scratch_operands = 0 : i64, tpu.core_type = #tpu.core_type<tc>, window_params = [{transform_indices = @transform_0, window_bounds = array<i64: 1, 1, 8, 32>}, {transform_indices = @transform_1, window_bounds = array<i64: 1, 1, 8, 32>}, {transform_indices = @transform_2, window_bounds = array<i64: 1, 1, 8, 32>}, {transform_indices = @transform_3, window_bounds = array<i64: 1, 1, 8>}, {transform_indices = @transform_4, window_bounds = array<i64: 1, 8, 32>}]} {
    %c0 = arith.constant 0 : index
    %c0_0 = arith.constant 0 : index
    %c0_1 = arith.constant 0 : index
    %c0_2 = arith.constant 0 : index
    %0 = vector.load %arg2[%c0, %c0_0, %c0_1, %c0_2] : memref<1x1x8x32xf32, #tpu.memory_space<vmem>>, vector<1x1x8x32xf32>
    %1 = vector.shape_cast %0 : vector<1x1x8x32xf32> to vector<8x32xf32>
    %c0_3 = arith.constant 0 : index
    %c0_4 = arith.constant 0 : index
    %c0_5 = arith.constant 0 : index
    %c0_6 = arith.constant 0 : index
    %2 = vector.load %arg3[%c0_3, %c0_4, %c0_5, %c0_6] : memref<1x1x8x32xf32, #tpu.memory_space<vmem>>, vector<1x1x8x32xf32>
    %3 = vector.shape_cast %2 : vector<1x1x8x32xf32> to vector<8x32xf32>
    %c0_7 = arith.constant 0 : index
    %c0_8 = arith.constant 0 : index
    %c0_9 = arith.constant 0 : index
    %c0_10 = arith.constant 0 : index
    %4 = vector.load %arg4[%c0_7, %c0_8, %c0_9, %c0_10] : memref<1x1x8x32xf32, #tpu.memory_space<vmem>>, vector<1x1x8x32xf32>
    %5 = vector.shape_cast %4 : vector<1x1x8x32xf32> to vector<8x32xf32>
    %c0_11 = arith.constant 0 : index
    %c0_12 = arith.constant 0 : index
    %c0_13 = arith.constant 0 : index
    %6 = vector.load %arg5[%c0_11, %c0_12, %c0_13] : memref<1x1x8xf32, #tpu.memory_space<vmem>>, vector<1x1x8xf32>
    %7 = vector.shape_cast %6 : vector<1x1x8xf32> to vector<1x8xf32>
    %8 = vector.extract_strided_slice %1 {offsets = [0, 0], sizes = [8, 16], strides = [1, 1]} : vector<8x32xf32> to vector<8x16xf32>
    %9 = vector.extract_strided_slice %3 {offsets = [0, 0], sizes = [8, 16], strides = [1, 1]} : vector<8x32xf32> to vector<8x16xf32>
    %10 = vector.extract_strided_slice %5 {offsets = [0, 0], sizes = [8, 16], strides = [1, 1]} : vector<8x32xf32> to vector<8x16xf32>
    %cst = arith.constant dense<0.000000e+00> : vector<8x8xf32>
    %11 = tpu.matmul %8, %9, %cst {dimension_numbers = #tpu.dot_dimension_numbers<[1], [1], [0], [0], [0, 0, 1, 0], [], []>} : vector<8x16xf32>, vector<8x16xf32>, vector<8x8xf32> -> vector<8x8xf32>
    %cst_14 = arith.constant 2.500000e-01 : f32
    %12 = vector.broadcast %cst_14 : f32 to vector<8x8xf32>
    %13 = arith.mulf %11, %12 : vector<8x8xf32>
    %14 = vector.broadcast %7 : vector<1x8xf32> to vector<8x8xf32>
    %15 = arith.addf %13, %14 : vector<8x8xf32>
    %cst_15 = arith.constant dense<0xFF800000> : vector<8xf32>
    %16 = vector.multi_reduction <maximumf>, %15, %cst_15 [1] : vector<8x8xf32> to vector<8xf32>
    %17 = vector.shape_cast %16 : vector<8xf32> to vector<8x1xf32>
    %18 = vector.broadcast %17 : vector<8x1xf32> to vector<8x8xf32>
    %19 = arith.subf %15, %18 : vector<8x8xf32>
    %20 = math.exp %19 : vector<8x8xf32>
    %cst_16 = arith.constant dense<0.000000e+00> : vector<8xf32>
    %21 = vector.multi_reduction <add>, %20, %cst_16 [1] : vector<8x8xf32> to vector<8xf32>
    %22 = vector.shape_cast %21 : vector<8xf32> to vector<8x1xf32>
    %23 = tpu.reciprocal %22 {approx = true} : vector<8x1xf32> -> vector<8x1xf32>
    %24 = vector.broadcast %23 : vector<8x1xf32> to vector<8x8xf32>
    %25 = arith.mulf %20, %24 : vector<8x8xf32>
    %cst_17 = arith.constant dense<0.000000e+00> : vector<8x16xf32>
    %26 = tpu.matmul %25, %10, %cst_17 {dimension_numbers = #tpu.dot_dimension_numbers<[1], [0], [0], [1], [0, 0, 1, 1], [], []>} : vector<8x8xf32>, vector<8x16xf32>, vector<8x16xf32> -> vector<8x16xf32>
    %27 = vector.extract_strided_slice %1 {offsets = [0, 16], sizes = [8, 16], strides = [1, 1]} : vector<8x32xf32> to vector<8x16xf32>
    %28 = vector.extract_strided_slice %3 {offsets = [0, 16], sizes = [8, 16], strides = [1, 1]} : vector<8x32xf32> to vector<8x16xf32>
    %29 = vector.extract_strided_slice %5 {offsets = [0, 16], sizes = [8, 16], strides = [1, 1]} : vector<8x32xf32> to vector<8x16xf32>
    %cst_18 = arith.constant dense<0.000000e+00> : vector<8x8xf32>
    %30 = tpu.matmul %27, %28, %cst_18 {dimension_numbers = #tpu.dot_dimension_numbers<[1], [1], [0], [0], [0, 0, 1, 0], [], []>} : vector<8x16xf32>, vector<8x16xf32>, vector<8x8xf32> -> vector<8x8xf32>
    %cst_19 = arith.constant 2.500000e-01 : f32
    %31 = vector.broadcast %cst_19 : f32 to vector<8x8xf32>
    %32 = arith.mulf %30, %31 : vector<8x8xf32>
    %33 = vector.broadcast %7 : vector<1x8xf32> to vector<8x8xf32>
    %34 = arith.addf %32, %33 : vector<8x8xf32>
    %cst_20 = arith.constant dense<0xFF800000> : vector<8xf32>
    %35 = vector.multi_reduction <maximumf>, %34, %cst_20 [1] : vector<8x8xf32> to vector<8xf32>
    %36 = vector.shape_cast %35 : vector<8xf32> to vector<8x1xf32>
    %37 = vector.broadcast %36 : vector<8x1xf32> to vector<8x8xf32>
    %38 = arith.subf %34, %37 : vector<8x8xf32>
    %39 = math.exp %38 : vector<8x8xf32>
    %cst_21 = arith.constant dense<0.000000e+00> : vector<8xf32>
    %40 = vector.multi_reduction <add>, %39, %cst_21 [1] : vector<8x8xf32> to vector<8xf32>
    %41 = vector.shape_cast %40 : vector<8xf32> to vector<8x1xf32>
    %42 = tpu.reciprocal %41 {approx = true} : vector<8x1xf32> -> vector<8x1xf32>
    %43 = vector.broadcast %42 : vector<8x1xf32> to vector<8x8xf32>
    %44 = arith.mulf %39, %43 : vector<8x8xf32>
    %cst_22 = arith.constant dense<0.000000e+00> : vector<8x16xf32>
    %45 = tpu.matmul %44, %29, %cst_22 {dimension_numbers = #tpu.dot_dimension_numbers<[1], [0], [0], [1], [0, 0, 1, 1], [], []>} : vector<8x8xf32>, vector<8x16xf32>, vector<8x16xf32> -> vector<8x16xf32>
    %46 = tpu.concatenate %26, %45 in 1 : vector<8x16xf32>, vector<8x16xf32> -> vector<8x32xf32>
    %c0_23 = arith.constant 0 : index
    %c0_24 = arith.constant 0 : index
    %c0_25 = arith.constant 0 : index
    %47 = vector.load %arg6[%c0_23, %c0_24, %c0_25] : memref<1x8x32xf32, #tpu.memory_space<vmem>>, vector<1x8x32xf32>
    %48 = vector.shape_cast %47 : vector<1x8x32xf32> to vector<8x32xf32>
    %49 = vector.shape_cast %46 : vector<8x32xf32> to vector<1x8x32xf32>
    tpu.vector_store %arg6[%c0_23, %c0_24, %c0_25], %49 {strides = array<i32>} : memref<1x8x32xf32, #tpu.memory_space<vmem>>, vector<1x8x32xf32>,
    return
  }
  func.func @transform_0(%arg0: i32, %arg1: i32) -> (i32, i32, i32, i32) {
    %c0_i32 = arith.constant 0 : i32
    %c0_i32_0 = arith.constant 0 : i32
    %c0_i32_1 = arith.constant 0 : i32
    return %c0_i32, %arg0, %arg1, %c0_i32_0 : i32, i32, i32, i32
  }
  func.func @transform_1(%arg0: i32, %arg1: i32) -> (i32, i32, i32, i32) {
    %c1_i32 = arith.constant 1 : i32
    %c0_i32 = arith.constant 0 : i32
    %c0_i32_0 = arith.constant 0 : i32
    %c0_i32_1 = arith.constant 0 : i32
    return %c1_i32, %arg0, %c0_i32, %c0_i32_0 : i32, i32, i32, i32
  }
  func.func @transform_2(%arg0: i32, %arg1: i32) -> (i32, i32, i32, i32) {
    %c2_i32 = arith.constant 2 : i32
    %c0_i32 = arith.constant 0 : i32
    %c0_i32_0 = arith.constant 0 : i32
    %c0_i32_1 = arith.constant 0 : i32
    return %c2_i32, %arg0, %c0_i32, %c0_i32_0 : i32, i32, i32, i32
  }
  func.func @transform_3(%arg0: i32, %arg1: i32) -> (i32, i32, i32) {
    %c0_i32 = arith.constant 0 : i32
    %c0_i32_0 = arith.constant 0 : i32
    %c0_i32_1 = arith.constant 0 : i32
    return %arg0, %c0_i32, %c0_i32_0 : i32, i32, i32
  }
  func.func @transform_4(%arg0: i32, %arg1: i32) -> (i32, i32, i32) {
    %c0_i32 = arith.constant 0 : i32
    %c0_i32_0 = arith.constant 0 : i32
    return %arg0, %arg1, %c0_i32 : i32, i32, i32
  }
}

module attributes {stable_mosaic.version = 11 : i64} {
  func.func @_linear_kernel(%arg0: i32, %arg1: i32, %arg2: i32, %arg3: memref<16x32xf32, #tpu.memory_space<vmem>>, %arg4: memref<32x32xf32, #tpu.memory_space<vmem>>, %arg5: memref<1x32xf32, #tpu.memory_space<vmem>>, %arg6: memref<16x32xf32, #tpu.memory_space<vmem>>, %arg7: memref<16x32xf32, #tpu.memory_space<vmem>>) attributes {dimension_semantics = [#tpu.dimension_semantics<parallel>, #tpu.dimension_semantics<parallel>, #tpu.dimension_semantics<arbitrary>], iteration_bounds = array<i64: 1, 1, 1>, scalar_prefetch = 0 : i64, scratch_operands = 1 : i64, tpu.core_type = #tpu.core_type<tc>, window_params = [{transform_indices = @transform_0, window_bounds = array<i64: 16, 32>}, {transform_indices = @transform_1, window_bounds = array<i64: 32, 32>}, {transform_indices = @transform_2, window_bounds = array<i64: 1, 32>}, {transform_indices = @transform_3, window_bounds = array<i64: 16, 32>}]} {
    %c0_i32 = arith.constant 0 : i32
    %0 = arith.cmpi eq, %arg2, %c0_i32 : i32
    %1 = arith.extui %0 : i1 to i32
    %c0_i32_0 = arith.constant 0 : i32
    %2 = arith.cmpi ne, %1, %c0_i32_0 : i32
    scf.if %2 {
      %cst_10 = arith.constant 0.000000e+00 : f32
      %12 = vector.broadcast %cst_10 : f32 to vector<16x32xf32>
      %c0_11 = arith.constant 0 : index
      %c0_12 = arith.constant 0 : index
      %13 = vector.load %arg7[%c0_11, %c0_12] : memref<16x32xf32, #tpu.memory_space<vmem>>, vector<16x32xf32>
      tpu.vector_store %arg7[%c0_11, %c0_12], %12 {strides = array<i32>} : memref<16x32xf32, #tpu.memory_space<vmem>>, vector<16x32xf32>,
    } else {
    }
    %c0 = arith.constant 0 : index
    %c0_1 = arith.constant 0 : index
    %3 = vector.load %arg7[%c0, %c0_1] : memref<16x32xf32, #tpu.memory_space<vmem>>, vector<16x32xf32>
    %c0_2 = arith.constant 0 : index
    %c0_3 = arith.constant 0 : index
    %4 = vector.load %arg3[%c0_2, %c0_3] : memref<16x32xf32, #tpu.memory_space<vmem>>, vector<16x32xf32>
    %c0_4 = arith.constant 0 : index
    %c0_5 = arith.constant 0 : index
    %5 = vector.load %arg4[%c0_4, %c0_5] : memref<32x32xf32, #tpu.memory_space<vmem>>, vector<32x32xf32>
    %cst = arith.constant dense<0.000000e+00> : vector<16x32xf32>
    %6 = tpu.matmul %4, %5, %cst {dimension_numbers = #tpu.dot_dimension_numbers<[1], [1], [0], [0], [0, 0, 1, 0], [], []>} : vector<16x32xf32>, vector<32x32xf32>, vector<16x32xf32> -> vector<16x32xf32>
    %7 = arith.addf %3, %6 : vector<16x32xf32>
    %c0_6 = arith.constant 0 : index
    %c0_7 = arith.constant 0 : index
    %8 = vector.load %arg7[%c0_6, %c0_7] : memref<16x32xf32, #tpu.memory_space<vmem>>, vector<16x32xf32>
    tpu.vector_store %arg7[%c0_6, %c0_7], %7 {strides = array<i32>} : memref<16x32xf32, #tpu.memory_space<vmem>>, vector<16x32xf32>,
    %c0_i32_8 = arith.constant 0 : i32
    %9 = arith.cmpi eq, %arg2, %c0_i32_8 : i32
    %10 = arith.extui %9 : i1 to i32
    %c0_i32_9 = arith.constant 0 : i32
    %11 = arith.cmpi ne, %10, %c0_i32_9 : i32
    scf.if %11 {
      %c0_10 = arith.constant 0 : index
      %c0_11 = arith.constant 0 : index
      %12 = vector.load %arg7[%c0_10, %c0_11] : memref<16x32xf32, #tpu.memory_space<vmem>>, vector<16x32xf32>
      %c0_12 = arith.constant 0 : index
      %c0_13 = arith.constant 0 : index
      %13 = vector.load %arg5[%c0_12, %c0_13] : memref<1x32xf32, #tpu.memory_space<vmem>>, vector<1x32xf32>
      %14 = vector.broadcast %13 : vector<1x32xf32> to vector<16x32xf32>
      %15 = arith.addf %12, %14 : vector<16x32xf32>
      %c0_14 = arith.constant 0 : index
      %c0_15 = arith.constant 0 : index
      %16 = vector.load %arg6[%c0_14, %c0_15] : memref<16x32xf32, #tpu.memory_space<vmem>>, vector<16x32xf32>
      tpu.vector_store %arg6[%c0_14, %c0_15], %15 {strides = array<i32>} : memref<16x32xf32, #tpu.memory_space<vmem>>, vector<16x32xf32>,
    } else {
    }
    return
  }
  func.func @transform_0(%arg0: i32, %arg1: i32, %arg2: i32) -> (i32, i32) {
    %c0_i32 = arith.constant 0 : i32
    return %arg0, %arg2 : i32, i32
  }
  func.func @transform_1(%arg0: i32, %arg1: i32, %arg2: i32) -> (i32, i32) {
    %c0_i32 = arith.constant 0 : i32
    return %arg1, %arg2 : i32, i32
  }
  func.func @transform_2(%arg0: i32, %arg1: i32, %arg2: i32) -> (i32, i32) {
    %c0_i32 = arith.constant 0 : i32
    %c0_i32_0 = arith.constant 0 : i32
    return %c0_i32, %arg1 : i32, i32
  }
  func.func @transform_3(%arg0: i32, %arg1: i32, %arg2: i32) -> (i32, i32) {
    %c0_i32 = arith.constant 0 : i32
    return %arg0, %arg1 : i32, i32
  }
}

</mosaic_0001>

<llo_original>
// kernel: attention_forward.3
$region0: #{attention_forward.3}
  #allocation0 [shape = 'u32[]', space=smem, size = 0x4, offset = 0x4, fixed_abs, tag = 'smem constant byte address 0x4 - core index']
  #allocation1 [shape = 'u32[144,128]{1,0:T(1,128)}', space=vmem, size = 0x12000, scoped, tag = 'internal scratch']
  #allocation2 [shape = 'f32[16,32]{1,0:T(8,128)}', space=vmem, size = 0x2000, scoped, tag = 'scratch operand']
  #allocation3 [shape = 'f32[16,32]{1,0:T(8,128)}', space=vmem, size = 0x2000, scoped, tag = 'scratch operand']
  #allocation4 [shape = 'f32[16,32]{1,0:T(8,128)}', space=vmem, size = 0x2000, scoped, tag = 'scratch operand']
  %s0 = inlined_call_operand.vmem [shape: f32[16,32], index: 0, kind: input, shape index: {}]
  %s1 = inlined_call_operand.vmem [shape: f32[3,32,32], index: 1, kind: input, shape index: {}]
  %s2 = inlined_call_operand.vmem [shape: f32[3,1,32], index: 2, kind: input, shape index: {}]
  %s3 = inlined_call_operand.vmem [shape: f32[3,16,32], index: 3, kind: output, shape index: {}]
  %s4 = sld [smem:[#allocation0]]
  $region30: #{attention_forward.3} parent=0
    _
  %s6 = ssub.s32 1, %s4
  %s7 = scalar_select 0, %s6, %s4
  // Predicated region
  $region2: #{attention_forward.3} parent=0 // pred_check
    _
  $region3: #{attention_forward.3} parent=0 // pred_check_branch
    %9 = sbr.rel (0) target = $region5
  $region4: #{attention_forward.3} parent=0 // pred_region
    _
  $region5: #{attention_forward.3} parent=0 // pred_fallthru
    _
  // Predicated region
  $region6: #{attention_forward.3} parent=0 // pred_check
    _
  $region7: #{attention_forward.3} parent=0 // pred_check_branch
    %11 = sbr.rel (0) target = $region9
  $region8: #{attention_forward.3} parent=0 // pred_region
    _
  $region9: #{attention_forward.3} parent=0 // pred_fallthru
    _
  // Predicated region
  $region10: #{attention_forward.3} parent=0 // pred_check
    _
  $region11: #{attention_forward.3} parent=0 // pred_check_branch
    %13 = sbr.rel (0) target = $region13
  $region12: #{attention_forward.3} parent=0 // pred_region
    _
  $region13: #{attention_forward.3} parent=0 // pred_fallthru
    _
  %p14 = scmp.eq.s32.totalorder 0, 0
  // Predicated region
  $region14: #{attention_forward.3} parent=0 // pred_check
    %p15 = pneg %p14
  $region15: #{attention_forward.3} parent=0 // pred_check_branch
    %17 = sbr.rel (%p15) target = $region17
  $region16: #{attention_forward.3} parent=0 // pred_region
    %vm18 = vcmask 261120
    %19 = vst.msk [vmem:[#allocation2] sm:$0xff] %vm18, 0.0
    %20 = vst.msk [vmem:[#allocation2 + $0x8] sm:$0xff] %vm18, 0.0
    %21 = vst.msk [vmem:[#allocation3] sm:$0xff] %vm18, 0.0
    %22 = vst.msk [vmem:[#allocation3 + $0x8] sm:$0xff] %vm18, 0.0
    %23 = vst.msk [vmem:[#allocation4] sm:$0xff] %vm18, 0.0
    %24 = vst.msk [vmem:[#allocation4 + $0x8] sm:$0xff] %vm18, 0.0
  $region17: #{attention_forward.3} parent=0 // pred_fallthru
    _
  %v25 = vld [vmem:[%s0] sm:$0xff]
  %v26 = vld [vmem:[%s0 + $0x8] sm:$0xff]
  %v27 = vld [vmem:[%s1] sm:$0xff]
  %v28 = vld [vmem:[%s1 + $0x8] sm:$0xff]
  %v29 = vld [vmem:[%s1 + $0x10] sm:$0xff]
  %v30 = vld [vmem:[%s1 + $0x18] sm:$0xff]
  %v31 = vld [vmem:[#allocation2] sm:$0xff]
  %v32 = vld [vmem:[#allocation2 + $0x8] sm:$0xff]
  %vm33 = vcmask 261120
  %v35 = vsel %vm33, %v25, 0
  %v38 = vsel %vm33, %v26, 0
  %v41 = vsel %vm33, %v27, 0
  %v44 = vsel %vm33, %v28, 0
  %v47 = vsel %vm33, %v29, 0
  %v50 = vsel %vm33, %v30, 0
  %52 = vmatprep.subr.mxu0 0.0
  %53 = vmatpush1.xpose.msra.mxu0 %v41
  %54 = vmatprep.subr.mxu0 0.0
  %55 = vmatpush1.xpose.msra.mxu0 %v44
  %56 = vmatprep.subr.mxu0 0.0
  %57 = vmatpush1.xpose.msra.mxu0 %v47
  %58 = vmatprep.subr.mxu0 0.0
  %59 = vmatpush1.xpose.msra.mxu0 %v50
  %60 = vmatprep.subr.mxu0 0.0
  %61 = vmatpush1.xpose.msra.mxu0 0.0
  %62 = vmatprep.subr.mxu0 0.0
  %63 = vmatpush1.xpose.msra.mxu0 0.0
  %64 = vmatprep.subr.mxu0 0.0
  %65 = vmatpush1.xpose.msra.mxu0 0.0
  %66 = vmatprep.subr.mxu0 0.0
  %67 = vmatpush1.xpose.msra.mxu0 0.0
  %68 = vmatprep.subr.mxu0 0.0
  %69 = vmatpush1.xpose.msra.mxu0 0.0
  %70 = vmatprep.subr.mxu0 0.0
  %71 = vmatpush1.xpose.msra.mxu0 0.0
  %72 = vmatprep.subr.mxu0 0.0
  %73 = vmatpush1.xpose.msra.mxu0 0.0
  %74 = vmatprep.subr.mxu0 0.0
  %75 = vmatpush1.xpose.msra.mxu0 0.0
  %76 = vmatprep.subr.mxu0 0.0
  %77 = vmatpush1.xpose.msra.mxu0 0.0
  %78 = vmatprep.subr.mxu0 0.0
  %79 = vmatpush1.xpose.msra.mxu0 0.0
  %80 = vmatprep.subr.mxu0 0.0
  %81 = vmatpush1.xpose.msra.mxu0 0.0
  %82 = vmatprep.subr.mxu0 0.0
  %83 = vmatpush1.xpose.msra.mxu0 0.0
  %84 = vmatprep.subr.mxu0 0.0
  %85 = vmatpush1.xpose.msra.mxu0 0.0
  %86 = vmatprep.subr.mxu0 0.0
  %87 = vmatpush1.xpose.msra.mxu0 0.0
  %88 = vmatprep.subr.mxu0 0.0
  %89 = vmatpush1.xpose.msra.mxu0 0.0
  %90 = vmatprep.subr.mxu0 0.0
  %91 = vmatpush1.xpose.msra.mxu0 0.0
  %92 = vmatprep.subr.mxu0 0.0
  %93 = vmatpush1.xpose.msra.mxu0 0.0
  %94 = vmatprep.subr.mxu0 0.0
  %95 = vmatpush1.xpose.msra.mxu0 0.0
  %96 = vmatprep.subr.mxu0 0.0
  %97 = vmatpush1.xpose.msra.mxu0 0.0
  %98 = vmatprep.subr.mxu0 0.0
  %99 = vmatpush1.xpose.msra.mxu0 0.0
  %100 = vmatprep.subr.mxu0 0.0
  %101 = vmatpush1.xpose.msra.mxu0 0.0
  %102 = vmatprep.subr.mxu0 0.0
  %103 = vmatpush1.xpose.msra.mxu0 0.0
  %104 = vmatprep.subr.mxu0 0.0
  %105 = vmatpush1.xpose.msra.mxu0 0.0
  %106 = vmatprep.subr.mxu0 0.0
  %107 = vmatpush1.xpose.msra.mxu0 0.0
  %108 = vmatprep.subr.mxu0 0.0
  %109 = vmatpush1.xpose.msra.mxu0 0.0
  %110 = vmatprep.subr.mxu0 0.0
  %111 = vmatpush1.xpose.msra.mxu0 0.0
  %112 = vmatprep.subr.mxu0 0.0
  %113 = vmatpush1.xpose.msra.mxu0 0.0
  %114 = vmatprep.subr.mxu0 0.0
  %115 = vmatpush1.xpose.msra.mxu0 0.0
  %116 = vmatprep.mubr.f32.mxu0 0.0
  %117 = vmatmul.mubr.f32.gmra.mrb[0].mxu0 %v35
  %v118 = vpop.f32.mrb[0].mxu0
  %v119 = vadd.f32 0.0, %v118
  %v120 = vpop.f32.mrb[0].mxu0
  %121 = vmatprep.mubr.f32.mxu0 0.0
  %122 = vmatmul.mubr.f32.gmra.mrb[0].mxu0 %v38
  %v123 = vpop.f32.mrb[0].mxu0
  %v124 = vadd.f32 0.0, %v123
  %v125 = vpop.f32.mrb[0].mxu0
  %126 = vdwg.mxu0
  %v127 = vadd.f32 %v31, %v119
  %v128 = vadd.f32 %v32, %v124
  %129 = vst.msk [vmem:[#allocation2] sm:$0xff] %vm33, %v127
  %130 = vst.msk [vmem:[#allocation2 + $0x8] sm:$0xff] %vm33, %v128
  %s131 = scalar_lea.vmem %s1, 32
  %v132 = vld [vmem:[%s131] sm:$0xff]
  %v133 = vld [vmem:[%s131 + $0x8] sm:$0xff]
  %v134 = vld [vmem:[%s131 + $0x10] sm:$0xff]
  %v135 = vld [vmem:[%s131 + $0x18] sm:$0xff]
  %v136 = vld [vmem:[#allocation3] sm:$0xff]
  %v137 = vld [vmem:[#allocation3 + $0x8] sm:$0xff]
  %v139 = vsel %vm33, %v132, 0
  %v142 = vsel %vm33, %v133, 0
  %v145 = vsel %vm33, %v134, 0
  %v148 = vsel %vm33, %v135, 0
  %150 = vmatprep.subr.mxu0 0.0
  %151 = vmatpush1.xpose.msra.mxu0 %v139
  %152 = vmatprep.subr.mxu0 0.0
  %153 = vmatpush1.xpose.msra.mxu0 %v142
  %154 = vmatprep.subr.mxu0 0.0
  %155 = vmatpush1.xpose.msra.mxu0 %v145
  %156 = vmatprep.subr.mxu0 0.0
  %157 = vmatpush1.xpose.msra.mxu0 %v148
  %158 = vmatprep.subr.mxu0 0.0
  %159 = vmatpush1.xpose.msra.mxu0 0.0
  %160 = vmatprep.subr.mxu0 0.0
  %161 = vmatpush1.xpose.msra.mxu0 0.0
  %162 = vmatprep.subr.mxu0 0.0
  %163 = vmatpush1.xpose.msra.mxu0 0.0
  %164 = vmatprep.subr.mxu0 0.0
  %165 = vmatpush1.xpose.msra.mxu0 0.0
  %166 = vmatprep.subr.mxu0 0.0
  %167 = vmatpush1.xpose.msra.mxu0 0.0
  %168 = vmatprep.subr.mxu0 0.0
  %169 = vmatpush1.xpose.msra.mxu0 0.0
  %170 = vmatprep.subr.mxu0 0.0
  %171 = vmatpush1.xpose.msra.mxu0 0.0
  %172 = vmatprep.subr.mxu0 0.0
  %173 = vmatpush1.xpose.msra.mxu0 0.0
  %174 = vmatprep.subr.mxu0 0.0
  %175 = vmatpush1.xpose.msra.mxu0 0.0
  %176 = vmatprep.subr.mxu0 0.0
  %177 = vmatpush1.xpose.msra.mxu0 0.0
  %178 = vmatprep.subr.mxu0 0.0
  %179 = vmatpush1.xpose.msra.mxu0 0.0
  %180 = vmatprep.subr.mxu0 0.0
  %181 = vmatpush1.xpose.msra.mxu0 0.0
  %182 = vmatprep.subr.mxu0 0.0
  %183 = vmatpush1.xpose.msra.mxu0 0.0
  %184 = vmatprep.subr.mxu0 0.0
  %185 = vmatpush1.xpose.msra.mxu0 0.0
  %186 = vmatprep.subr.mxu0 0.0
  %187 = vmatpush1.xpose.msra.mxu0 0.0
  %188 = vmatprep.subr.mxu0 0.0
  %189 = vmatpush1.xpose.msra.mxu0 0.0
  %190 = vmatprep.subr.mxu0 0.0
  %191 = vmatpush1.xpose.msra.mxu0 0.0
  %192 = vmatprep.subr.mxu0 0.0
  %193 = vmatpush1.xpose.msra.mxu0 0.0
  %194 = vmatprep.subr.mxu0 0.0
  %195 = vmatpush1.xpose.msra.mxu0 0.0
  %196 = vmatprep.subr.mxu0 0.0
  %197 = vmatpush1.xpose.msra.mxu0 0.0
  %198 = vmatprep.subr.mxu0 0.0
  %199 = vmatpush1.xpose.msra.mxu0 0.0
  %200 = vmatprep.subr.mxu0 0.0
  %201 = vmatpush1.xpose.msra.mxu0 0.0
  %202 = vmatprep.subr.mxu0 0.0
  %203 = vmatpush1.xpose.msra.mxu0 0.0
  %204 = vmatprep.subr.mxu0 0.0
  %205 = vmatpush1.xpose.msra.mxu0 0.0
  %206 = vmatprep.subr.mxu0 0.0
  %207 = vmatpush1.xpose.msra.mxu0 0.0
  %208 = vmatprep.subr.mxu0 0.0
  %209 = vmatpush1.xpose.msra.mxu0 0.0
  %210 = vmatprep.subr.mxu0 0.0
  %211 = vmatpush1.xpose.msra.mxu0 0.0
  %212 = vmatprep.subr.mxu0 0.0
  %213 = vmatpush1.xpose.msra.mxu0 0.0
  %214 = vmatprep.mubr.f32.mxu0 0.0
  %215 = vmatmul.mubr.f32.gmra.mrb[0].mxu0 %v35
  %v216 = vpop.f32.mrb[0].mxu0
  %v217 = vadd.f32 0.0, %v216
  %v218 = vpop.f32.mrb[0].mxu0
  %219 = vmatprep.mubr.f32.mxu0 0.0
  %220 = vmatmul.mubr.f32.gmra.mrb[0].mxu0 %v38
  %v221 = vpop.f32.mrb[0].mxu0
  %v222 = vadd.f32 0.0, %v221
  %v223 = vpop.f32.mrb[0].mxu0
  %224 = vdwg.mxu0
  %v225 = vadd.f32 %v136, %v217
  %v226 = vadd.f32 %v137, %v222
  %227 = vst.msk [vmem:[#allocation3] sm:$0xff] %vm33, %v225
  %228 = vst.msk [vmem:[#allocation3 + $0x8] sm:$0xff] %vm33, %v226
  %s229 = scalar_lea.vmem %s1, 64
  %v230 = vld [vmem:[%s229] sm:$0xff]
  %v231 = vld [vmem:[%s229 + $0x8] sm:$0xff]
  %v232 = vld [vmem:[%s229 + $0x10] sm:$0xff]
  %v233 = vld [vmem:[%s229 + $0x18] sm:$0xff]
  %v234 = vld [vmem:[#allocation4] sm:$0xff]
  %v235 = vld [vmem:[#allocation4 + $0x8] sm:$0xff]
  %v237 = vsel %vm33, %v230, 0
  %v240 = vsel %vm33, %v231, 0
  %v243 = vsel %vm33, %v232, 0
  %v246 = vsel %vm33, %v233, 0
  %248 = vmatprep.subr.mxu0 0.0
  %249 = vmatpush1.xpose.msra.mxu0 %v237
  %250 = vmatprep.subr.mxu0 0.0
  %251 = vmatpush1.xpose.msra.mxu0 %v240
  %252 = vmatprep.subr.mxu0 0.0
  %253 = vmatpush1.xpose.msra.mxu0 %v243
  %254 = vmatprep.subr.mxu0 0.0
  %255 = vmatpush1.xpose.msra.mxu0 %v246
  %256 = vmatprep.subr.mxu0 0.0
  %257 = vmatpush1.xpose.msra.mxu0 0.0
  %258 = vmatprep.subr.mxu0 0.0
  %259 = vmatpush1.xpose.msra.mxu0 0.0
  %260 = vmatprep.subr.mxu0 0.0
  %261 = vmatpush1.xpose.msra.mxu0 0.0
  %262 = vmatprep.subr.mxu0 0.0
  %263 = vmatpush1.xpose.msra.mxu0 0.0
  %264 = vmatprep.subr.mxu0 0.0
  %265 = vmatpush1.xpose.msra.mxu0 0.0
  %266 = vmatprep.subr.mxu0 0.0
  %267 = vmatpush1.xpose.msra.mxu0 0.0
  %268 = vmatprep.subr.mxu0 0.0
  %269 = vmatpush1.xpose.msra.mxu0 0.0
  %270 = vmatprep.subr.mxu0 0.0
  %271 = vmatpush1.xpose.msra.mxu0 0.0
  %272 = vmatprep.subr.mxu0 0.0
  %273 = vmatpush1.xpose.msra.mxu0 0.0
  %274 = vmatprep.subr.mxu0 0.0
  %275 = vmatpush1.xpose.msra.mxu0 0.0
  %276 = vmatprep.subr.mxu0 0.0
  %277 = vmatpush1.xpose.msra.mxu0 0.0
  %278 = vmatprep.subr.mxu0 0.0
  %279 = vmatpush1.xpose.msra.mxu0 0.0
  %280 = vmatprep.subr.mxu0 0.0
  %281 = vmatpush1.xpose.msra.mxu0 0.0
  %282 = vmatprep.subr.mxu0 0.0
  %283 = vmatpush1.xpose.msra.mxu0 0.0
  %284 = vmatprep.subr.mxu0 0.0
  %285 = vmatpush1.xpose.msra.mxu0 0.0
  %286 = vmatprep.subr.mxu0 0.0
  %287 = vmatpush1.xpose.msra.mxu0 0.0
  %288 = vmatprep.subr.mxu0 0.0
  %289 = vmatpush1.xpose.msra.mxu0 0.0
  %290 = vmatprep.subr.mxu0 0.0
  %291 = vmatpush1.xpose.msra.mxu0 0.0
  %292 = vmatprep.subr.mxu0 0.0
  %293 = vmatpush1.xpose.msra.mxu0 0.0
  %294 = vmatprep.subr.mxu0 0.0
  %295 = vmatpush1.xpose.msra.mxu0 0.0
  %296 = vmatprep.subr.mxu0 0.0
  %297 = vmatpush1.xpose.msra.mxu0 0.0
  %298 = vmatprep.subr.mxu0 0.0
  %299 = vmatpush1.xpose.msra.mxu0 0.0
  %300 = vmatprep.subr.mxu0 0.0
  %301 = vmatpush1.xpose.msra.mxu0 0.0
  %302 = vmatprep.subr.mxu0 0.0
  %303 = vmatpush1.xpose.msra.mxu0 0.0
  %304 = vmatprep.subr.mxu0 0.0
  %305 = vmatpush1.xpose.msra.mxu0 0.0
  %306 = vmatprep.subr.mxu0 0.0
  %307 = vmatpush1.xpose.msra.mxu0 0.0
  %308 = vmatprep.subr.mxu0 0.0
  %309 = vmatpush1.xpose.msra.mxu0 0.0
  %310 = vmatprep.subr.mxu0 0.0
  %311 = vmatpush1.xpose.msra.mxu0 0.0
  %312 = vmatprep.mubr.f32.mxu0 0.0
  %313 = vmatmul.mubr.f32.gmra.mrb[0].mxu0 %v35
  %v314 = vpop.f32.mrb[0].mxu0
  %v315 = vadd.f32 0.0, %v314
  %v316 = vpop.f32.mrb[0].mxu0
  %317 = vmatprep.mubr.f32.mxu0 0.0
  %318 = vmatmul.mubr.f32.gmra.mrb[0].mxu0 %v38
  %v319 = vpop.f32.mrb[0].mxu0
  %v320 = vadd.f32 0.0, %v319
  %v321 = vpop.f32.mrb[0].mxu0
  %322 = vdwg.mxu0
  %v323 = vadd.f32 %v234, %v315
  %v324 = vadd.f32 %v235, %v320
  %325 = vst.msk [vmem:[#allocation4] sm:$0xff] %vm33, %v323
  %326 = vst.msk [vmem:[#allocation4 + $0x8] sm:$0xff] %vm33, %v324
  // Predicated region
  $region18: #{attention_forward.3} parent=0 // pred_check
    %p327 = pneg %p14
  $region19: #{attention_forward.3} parent=0 // pred_check_branch
    %329 = sbr.rel (%p327) target = $region21
  $region20: #{attention_forward.3} parent=0 // pred_region
    %v330 = vld [vmem:[#allocation2] sm:$0xff]
    %v331 = vld [vmem:[#allocation2 + $0x8] sm:$0xff]
    %v332 = vld [vmem:[%s2] sm:$0x1]
    %v334 = vlaneseq
    %v335 = vshrl.u32 %v334, 7
    %v336 = vsub.s32 0, %v335
    %v337 = vrot.slane %v332, %v336
    %v339 = vadd.f32 %v330, %v337
    %v340 = vadd.f32 %v331, %v337
    %341 = vst.msk [vmem:[%s3] sm:$0xff] %vm33, %v339
    %342 = vst.msk [vmem:[%s3 + $0x8] sm:$0xff] %vm33, %v340
    %v343 = vld [vmem:[#allocation3] sm:$0xff]
    %v344 = vld [vmem:[#allocation3 + $0x8] sm:$0xff]
    %s345 = scalar_lea.vmem %s2, 1
    %v346 = vld [vmem:[%s345] sm:$0x1]
    %v348 = vlaneseq
    %v349 = vshrl.u32 %v348, 7
    %v350 = vsub.s32 0, %v349
    %v351 = vrot.slane %v346, %v350
    %v353 = vadd.f32 %v343, %v351
    %v354 = vadd.f32 %v344, %v351
    %s355 = scalar_lea.vmem %s3, 16
    %356 = vst.msk [vmem:[%s355] sm:$0xff] %vm33, %v353
    %357 = vst.msk [vmem:[%s355 + $0x8] sm:$0xff] %vm33, %v354
    %v358 = vld [vmem:[#allocation4] sm:$0xff]
    %v359 = vld [vmem:[#allocation4 + $0x8] sm:$0xff]
    %s360 = scalar_lea.vmem %s2, 2
    %v361 = vld [vmem:[%s360] sm:$0x1]
    %v363 = vlaneseq
    %v364 = vshrl.u32 %v363, 7
    %v365 = vsub.s32 0, %v364
    %v366 = vrot.slane %v361, %v365
    %v368 = vadd.f32 %v358, %v366
    %v369 = vadd.f32 %v359, %v366
    %s370 = scalar_lea.vmem %s3, 32
    %371 = vst.msk [vmem:[%s370] sm:$0xff] %vm33, %v368
    %372 = vst.msk [vmem:[%s370 + $0x8] sm:$0xff] %vm33, %v369
  $region21: #{attention_forward.3} parent=0 // pred_fallthru
    _
  // Predicated region
  $region22: #{attention_forward.3} parent=0 // pred_check
    _
  $region23: #{attention_forward.3} parent=0 // pred_check_branch
    %374 = sbr.rel (0) target = $region25
  $region24: #{attention_forward.3} parent=0 // pred_region
    _
  $region25: #{attention_forward.3} parent=0 // pred_fallthru
    _
  // Predicated region
  $region26: #{attention_forward.3} parent=0 // pred_check
    _
  $region27: #{attention_forward.3} parent=0 // pred_check_branch
    %376 = sbr.rel (0) target = $region29
  $region28: #{attention_forward.3} parent=0 // pred_region
    _
  $region29: #{attention_forward.3} parent=0 // pred_fallthru
    _

// kernel: attention_forward.5
$region0: #{attention_forward.5}
  #allocation0 [shape = 'u32[]', space=smem, size = 0x4, offset = 0x4, fixed_abs, tag = 'smem constant byte address 0x4 - core index']
  #allocation1 [shape = 'u32[144,128]{1,0:T(1,128)}', space=vmem, size = 0x12000, scoped, tag = 'internal scratch']
  #allocation2 [shape = 'f32[16,32]{1,0:T(8,128)}', space=vmem, size = 0x2000, scoped, tag = 'scratch operand']
  %s0 = inlined_call_operand.vmem [shape: f32[16,32], index: 0, kind: input, shape index: {}]
  %s1 = inlined_call_operand.vmem [shape: f32[32,32], index: 1, kind: input, shape index: {}]
  %s2 = inlined_call_operand.vmem [shape: f32[1,32], index: 2, kind: input, shape index: {}]
  %s3 = inlined_call_operand.hbm [shape: f32[16,32], index: 3, kind: output, shape index: {}]
  %s4 = sld [smem:[#allocation0]]
  $region30: #{attention_forward.5} parent=0
    _
  %s6 = ssub.s32 1, %s4
  %s7 = scalar_select 0, %s6, %s4
  $region1: #{attention_forward.5} parent=0
    #allocation3 [shape = 'u8[8192]{0}', space=vmem, size = 0x2000, scoped, tag = 'output window, operand 0, single buffered']
    #allocation4 [shape = 's32[1]{0}', space=sflag, size = 0x4, scoped, tag = 'scoped memory for attention_forward.5']
    %8 = vsyncpa [#allocation4], 0
    // Predicated region
    $region2: #{attention_forward.5} parent=1 // pred_check
      _
    $region3: #{attention_forward.5} parent=1 // pred_check_branch
      %10 = sbr.rel (0) target = $region5
    $region4: #{attention_forward.5} parent=1 // pred_region
      _
    $region5: #{attention_forward.5} parent=1 // pred_fallthru
      _
    // Predicated region
    $region6: #{attention_forward.5} parent=1 // pred_check
      _
    $region7: #{attention_forward.5} parent=1 // pred_check_branch
      %12 = sbr.rel (0) target = $region9
    $region8: #{attention_forward.5} parent=1 // pred_region
      _
    $region9: #{attention_forward.5} parent=1 // pred_fallthru
      _
    // Predicated region
    $region10: #{attention_forward.5} parent=1 // pred_check
      _
    $region11: #{attention_forward.5} parent=1 // pred_check_branch
      %14 = sbr.rel (0) target = $region13
    $region12: #{attention_forward.5} parent=1 // pred_region
      _
    $region13: #{attention_forward.5} parent=1 // pred_fallthru
      _
    %p15 = scmp.eq.s32.totalorder 0, 0
    // Predicated region
    $region14: #{attention_forward.5} parent=1 // pred_check
      %p16 = pneg %p15
    $region15: #{attention_forward.5} parent=1 // pred_check_branch
      %18 = sbr.rel (%p16) target = $region17
    $region16: #{attention_forward.5} parent=1 // pred_region
      %vm19 = vcmask 261120
      %20 = vst.msk [vmem:[#allocation2] sm:$0xff] %vm19, 0.0
      %21 = vst.msk [vmem:[#allocation2 + $0x8] sm:$0xff] %vm19, 0.0
    $region17: #{attention_forward.5} parent=1 // pred_fallthru
      _
    %v22 = vld [vmem:[#allocation2] sm:$0xff]
    %v23 = vld [vmem:[#allocation2 + $0x8] sm:$0xff]
    %v24 = vld [vmem:[%s0] sm:$0xff]
    %v25 = vld [vmem:[%s0 + $0x8] sm:$0xff]
    %v26 = vld [vmem:[%s1] sm:$0xff]
    %v27 = vld [vmem:[%s1 + $0x8] sm:$0xff]
    %v28 = vld [vmem:[%s1 + $0x10] sm:$0xff]
    %v29 = vld [vmem:[%s1 + $0x18] sm:$0xff]
    %vm30 = vcmask 261120
    %v32 = vsel %vm30, %v24, 0
    %v35 = vsel %vm30, %v25, 0
    %v38 = vsel %vm30, %v26, 0
    %v41 = vsel %vm30, %v27, 0
    %v44 = vsel %vm30, %v28, 0
    %v47 = vsel %vm30, %v29, 0
    %49 = vmatprep.subr.mxu0 0.0
    %50 = vmatpush1.xpose.msra.mxu0 %v38
    %51 = vmatprep.subr.mxu0 0.0
    %52 = vmatpush1.xpose.msra.mxu0 %v41
    %53 = vmatprep.subr.mxu0 0.0
    %54 = vmatpush1.xpose.msra.mxu0 %v44
    %55 = vmatprep.subr.mxu0 0.0
    %56 = vmatpush1.xpose.msra.mxu0 %v47
    %57 = vmatprep.subr.mxu0 0.0
    %58 = vmatpush1.xpose.msra.mxu0 0.0
    %59 = vmatprep.subr.mxu0 0.0
    %60 = vmatpush1.xpose.msra.mxu0 0.0
    %61 = vmatprep.subr.mxu0 0.0
    %62 = vmatpush1.xpose.msra.mxu0 0.0
    %63 = vmatprep.subr.mxu0 0.0
    %64 = vmatpush1.xpose.msra.mxu0 0.0
    %65 = vmatprep.subr.mxu0 0.0
    %66 = vmatpush1.xpose.msra.mxu0 0.0
    %67 = vmatprep.subr.mxu0 0.0
    %68 = vmatpush1.xpose.msra.mxu0 0.0
    %69 = vmatprep.subr.mxu0 0.0
    %70 = vmatpush1.xpose.msra.mxu0 0.0
    %71 = vmatprep.subr.mxu0 0.0
    %72 = vmatpush1.xpose.msra.mxu0 0.0
    %73 = vmatprep.subr.mxu0 0.0
    %74 = vmatpush1.xpose.msra.mxu0 0.0
    %75 = vmatprep.subr.mxu0 0.0
    %76 = vmatpush1.xpose.msra.mxu0 0.0
    %77 = vmatprep.subr.mxu0 0.0
    %78 = vmatpush1.xpose.msra.mxu0 0.0
    %79 = vmatprep.subr.mxu0 0.0
    %80 = vmatpush1.xpose.msra.mxu0 0.0
    %81 = vmatprep.subr.mxu0 0.0
    %82 = vmatpush1.xpose.msra.mxu0 0.0
    %83 = vmatprep.subr.mxu0 0.0
    %84 = vmatpush1.xpose.msra.mxu0 0.0
    %85 = vmatprep.subr.mxu0 0.0
    %86 = vmatpush1.xpose.msra.mxu0 0.0
    %87 = vmatprep.subr.mxu0 0.0
    %88 = vmatpush1.xpose.msra.mxu0 0.0
    %89 = vmatprep.subr.mxu0 0.0
    %90 = vmatpush1.xpose.msra.mxu0 0.0
    %91 = vmatprep.subr.mxu0 0.0
    %92 = vmatpush1.xpose.msra.mxu0 0.0
    %93 = vmatprep.subr.mxu0 0.0
    %94 = vmatpush1.xpose.msra.mxu0 0.0
    %95 = vmatprep.subr.mxu0 0.0
    %96 = vmatpush1.xpose.msra.mxu0 0.0
    %97 = vmatprep.subr.mxu0 0.0
    %98 = vmatpush1.xpose.msra.mxu0 0.0
    %99 = vmatprep.subr.mxu0 0.0
    %100 = vmatpush1.xpose.msra.mxu0 0.0
    %101 = vmatprep.subr.mxu0 0.0
    %102 = vmatpush1.xpose.msra.mxu0 0.0
    %103 = vmatprep.subr.mxu0 0.0
    %104 = vmatpush1.xpose.msra.mxu0 0.0
    %105 = vmatprep.subr.mxu0 0.0
    %106 = vmatpush1.xpose.msra.mxu0 0.0
    %107 = vmatprep.subr.mxu0 0.0
    %108 = vmatpush1.xpose.msra.mxu0 0.0
    %109 = vmatprep.subr.mxu0 0.0
    %110 = vmatpush1.xpose.msra.mxu0 0.0
    %111 = vmatprep.subr.mxu0 0.0
    %112 = vmatpush1.xpose.msra.mxu0 0.0
    %113 = vmatprep.mubr.f32.mxu0 0.0
    %114 = vmatmul.mubr.f32.gmra.mrb[0].mxu0 %v32
    %v115 = vpop.f32.mrb[0].mxu0
    %v116 = vadd.f32 0.0, %v115
    %v117 = vpop.f32.mrb[0].mxu0
    %118 = vmatprep.mubr.f32.mxu0 0.0
    %119 = vmatmul.mubr.f32.gmra.mrb[0].mxu0 %v35
    %v120 = vpop.f32.mrb[0].mxu0
    %v121 = vadd.f32 0.0, %v120
    %v122 = vpop.f32.mrb[0].mxu0
    %123 = vdwg.mxu0
    %v124 = vadd.f32 %v22, %v116
    %v125 = vadd.f32 %v23, %v121
    %126 = vst.msk [vmem:[#allocation2] sm:$0xff] %vm30, %v124
    %127 = vst.msk [vmem:[#allocation2 + $0x8] sm:$0xff] %vm30, %v125
    // Predicated region
    $region18: #{attention_forward.5} parent=1 // pred_check
      %p128 = pneg %p15
    $region19: #{attention_forward.5} parent=1 // pred_check_branch
      %130 = sbr.rel (%p128) target = $region21
    $region20: #{attention_forward.5} parent=1 // pred_region
      %v131 = vld [vmem:[#allocation2] sm:$0xff]
      %v132 = vld [vmem:[#allocation2 + $0x8] sm:$0xff]
      %v133 = vld [vmem:[%s2] sm:$0x1]
      %v135 = vlaneseq
      %v136 = vshrl.u32 %v135, 7
      %v137 = vsub.s32 0, %v136
      %v138 = vrot.slane %v133, %v137
      %v140 = vadd.f32 %v131, %v138
      %v141 = vadd.f32 %v132, %v138
      %142 = vst.msk [vmem:[#allocation3] sm:$0xff] %vm30, %v140
      %143 = vst.msk [vmem:[#allocation3 + $0x8] sm:$0xff] %vm30, %v141
    $region21: #{attention_forward.5} parent=1 // pred_fallthru
      _
    // Predicated region
    $region22: #{attention_forward.5} parent=1 // pred_check
      _
    $region23: #{attention_forward.5} parent=1 // pred_check_branch
      %145 = sbr.rel (0) target = $region25
    $region24: #{attention_forward.5} parent=1 // pred_region
      %s147 = ssub.s32 256, 256
      %148 = vsyncadd [#allocation4], %s147
      %s149 = sshll.u32 [#allocation3], 4
      %s150 = int_to_ptr.vmem [resolvable:$true] %s149
      %155 = dma.vmem_to_hbm [thread:$0]  %s150, 256, %s3, [#allocation4], 128, 128, 8
    $region25: #{attention_forward.5} parent=1 // pred_fallthru
      _
    // Predicated region
    $region26: #{attention_forward.5} parent=1 // pred_check
      _
    $region27: #{attention_forward.5} parent=1 // pred_check_branch
      %157 = sbr.rel (0) target = $region29
    $region28: #{attention_forward.5} parent=1 // pred_region
      %158 = dma.done [#allocation4], 256
    $region29: #{attention_forward.5} parent=1 // pred_fallthru
      _
    %159 = vsyncpa [#allocation4], 1

// kernel: attention_forward.4
$region0: #{attention_forward.4}
  #allocation0 [shape = 'u32[]', space=smem, size = 0x4, offset = 0x4, fixed_abs, tag = 'smem constant byte address 0x4 - core index']
  #allocation1 [shape = 'u32[144,128]{1,0:T(1,128)}', space=vmem, size = 0x12000, scoped, tag = 'internal scratch']
  %s0 = inlined_call_operand.vmem [shape: f32[3,2,8,32], index: 0, kind: input, shape index: {}, may-alias: {0,1,2}]
  %s1 = inlined_call_operand.vmem [shape: f32[3,2,8,32], index: 1, kind: input, shape index: {}, may-alias: {0,1,2}]
  %s2 = inlined_call_operand.vmem [shape: f32[3,2,8,32], index: 2, kind: input, shape index: {}, may-alias: {0,1,2}]
  %s3 = inlined_call_operand.vmem [shape: f32[2,1,8], index: 3, kind: input, shape index: {}]
  %s4 = inlined_call_operand.vmem [shape: f32[2,8,32], index: 4, kind: output, shape index: {}]
  %s5 = sld [smem:[#allocation0]]
  $region49: #{attention_forward.4} parent=0
    _
  %s7 = ssub.s32 1, %s5
  %s8 = scalar_select 0, %s7, %s5
  loop: start=0, step=1, limit=4
  $region2: #{attention_forward.4} parent=0 // loop_pre_header
    _
  $region3: #{attention_forward.4} parent=0 // loop_header
    %s10 = sphi 0, %s14
    %p11 = scmp.ge.s32.totalorder %s10, 4
    %s17 = sphi 0, %s29
    %s18 = sphi 0, %s25
    %s19 = sphi 0, %s17
    %s20 = sphi 0, %s18
    %s21 = sphi 0, %s19
    %s22 = sphi 0, %s20
    %s34 = sphi 0, %s36
    %s37 = sphi 0, %s34
    %s38 = sphi 0, %s37
    %s54 = sphi 0, %s38
    %s60 = sphi 0, %s62
    %s63 = sphi 0, %s60
    %s64 = sphi 0, %s63
    %s80 = sphi 0, %s64
    %s86 = sphi 0, %s88
    %s89 = sphi 0, %s86
    %s90 = sphi 0, %s89
    %s106 = sphi 0, %s90
    %s112 = sphi 0, %s114
    %s115 = sphi 0, %s112
    %s116 = sphi 0, %s115
    %s132 = sphi 0, %s116
    %s140 = sphi 0, %s142
    %s143 = sphi 0, %s140
    %s144 = sphi 0, %s143
    %s160 = sphi 0, %s144
  $region4: #{attention_forward.4} parent=0 // loop_header_branch
    %13 = sbr.rel (%p11) target = $region8
  $region5: #{attention_forward.4} parent=0 // loop_body
    %s15 = ssub.s32 %s10, 1
    %s16 = ssub.s32 %s10, 2
    %s23 = sadd.s32 1, %s18
    %p24 = scmp.ge.s32.totalorder %s23, 1
    %s25 = scalar_select %p24, 0, %s23
    %s26 = sadd.s32 1, %s17
    %s27 = scalar_select %p24, %s26, %s17
    %p28 = scmp.ge.s32.totalorder %s27, 2
    %s29 = scalar_select %p28, 0, %s27
    %s30 = ssub.s32 %s17, %s29
    %s31 = ssub.s32 %s18, %s25
    %s32 = sor.u32 %s30, %s31
    %p33 = scmp.eq.s32.totalorder %s32, 0
    %s35 = sadd.s32 %s34, 1
    %s36 = scalar_select %p33, %s34, %s35
    %p39 = pneg %p33
    %p40 = scmp.eq.s32.totalorder %s10, 1
    %p41 = por %p39, %p40
    %p42 = scmp.ne.s32.totalorder %s34, %s37
    %p43 = scmp.eq.s32.totalorder %s10, 0
    %p44 = por %p42, %p43
    %p45 = scmp.ne.s32.totalorder %s34, %s37
    %p46 = scmp.eq.s32.totalorder %s15, 1
    %p47 = por %p45, %p46
    %p48 = scmp.ne.s32.totalorder %s37, %s38
    %p49 = scmp.eq.s32.totalorder %s15, 0
    %p50 = por %p48, %p49
    %p51 = scmp.ne.s32.totalorder %s37, %s38
    %p52 = scmp.eq.s32.totalorder %s16, 1
    %p53 = por %p51, %p52
    %p55 = scmp.ne.s32.totalorder %s38, %s54
    %p56 = scmp.eq.s32.totalorder %s16, 0
    %p57 = por %p55, %p56
    %s58 = ssub.s32 %s17, %s29
    %p59 = scmp.eq.s32.totalorder %s58, 0
    %s61 = sadd.s32 %s60, 1
    %s62 = scalar_select %p59, %s60, %s61
    %p65 = pneg %p59
    %p66 = scmp.eq.s32.totalorder %s10, 1
    %p67 = por %p65, %p66
    %p68 = scmp.ne.s32.totalorder %s60, %s63
    %p69 = scmp.eq.s32.totalorder %s10, 0
    %p70 = por %p68, %p69
    %p71 = scmp.ne.s32.totalorder %s60, %s63
    %p72 = scmp.eq.s32.totalorder %s15, 1
    %p73 = por %p71, %p72
    %p74 = scmp.ne.s32.totalorder %s63, %s64
    %p75 = scmp.eq.s32.totalorder %s15, 0
    %p76 = por %p74, %p75
    %p77 = scmp.ne.s32.totalorder %s63, %s64
    %p78 = scmp.eq.s32.totalorder %s16, 1
    %p79 = por %p77, %p78
    %p81 = scmp.ne.s32.totalorder %s64, %s80
    %p82 = scmp.eq.s32.totalorder %s16, 0
    %p83 = por %p81, %p82
    %s84 = ssub.s32 %s17, %s29
    %p85 = scmp.eq.s32.totalorder %s84, 0
    %s87 = sadd.s32 %s86, 1
    %s88 = scalar_select %p85, %s86, %s87
    %p91 = pneg %p85
    %p92 = scmp.eq.s32.totalorder %s10, 1
    %p93 = por %p91, %p92
    %p94 = scmp.ne.s32.totalorder %s86, %s89
    %p95 = scmp.eq.s32.totalorder %s10, 0
    %p96 = por %p94, %p95
    %p97 = scmp.ne.s32.totalorder %s86, %s89
    %p98 = scmp.eq.s32.totalorder %s15, 1
    %p99 = por %p97, %p98
    %p100 = scmp.ne.s32.totalorder %s89, %s90
    %p101 = scmp.eq.s32.totalorder %s15, 0
    %p102 = por %p100, %p101
    %p103 = scmp.ne.s32.totalorder %s89, %s90
    %p104 = scmp.eq.s32.totalorder %s16, 1
    %p105 = por %p103, %p104
    %p107 = scmp.ne.s32.totalorder %s90, %s106
    %p108 = scmp.eq.s32.totalorder %s16, 0
    %p109 = por %p107, %p108
    %s110 = ssub.s32 %s17, %s29
    %p111 = scmp.eq.s32.totalorder %s110, 0
    %s113 = sadd.s32 %s112, 1
    %s114 = scalar_select %p111, %s112, %s113
    %p117 = pneg %p111
    %p118 = scmp.eq.s32.totalorder %s10, 1
    %p119 = por %p117, %p118
    %p120 = scmp.ne.s32.totalorder %s112, %s115
    %p121 = scmp.eq.s32.totalorder %s10, 0
    %p122 = por %p120, %p121
    %p123 = scmp.ne.s32.totalorder %s112, %s115
    %p124 = scmp.eq.s32.totalorder %s15, 1
    %p125 = por %p123, %p124
    %p126 = scmp.ne.s32.totalorder %s115, %s116
    %p127 = scmp.eq.s32.totalorder %s15, 0
    %p128 = por %p126, %p127
    %p129 = scmp.ne.s32.totalorder %s115, %s116
    %p130 = scmp.eq.s32.totalorder %s16, 1
    %p131 = por %p129, %p130
    %p133 = scmp.ne.s32.totalorder %s116, %s132
    %p134 = scmp.eq.s32.totalorder %s16, 0
    %p135 = por %p133, %p134
    %s136 = ssub.s32 %s17, %s29
    %s137 = ssub.s32 %s18, %s25
    %s138 = sor.u32 %s136, %s137
    %p139 = scmp.eq.s32.totalorder %s138, 0
    %s141 = sadd.s32 %s140, 1
    %s142 = scalar_select %p139, %s140, %s141
    %p145 = pneg %p139
    %p146 = scmp.eq.s32.totalorder %s10, 1
    %p147 = por %p145, %p146
    %p148 = scmp.ne.s32.totalorder %s140, %s143
    %p149 = scmp.eq.s32.totalorder %s10, 0
    %p150 = por %p148, %p149
    %p151 = scmp.ne.s32.totalorder %s140, %s143
    %p152 = scmp.eq.s32.totalorder %s15, 1
    %p153 = por %p151, %p152
    %p154 = scmp.ne.s32.totalorder %s143, %s144
    %p155 = scmp.eq.s32.totalorder %s15, 0
    %p156 = por %p154, %p155
    %p157 = scmp.ne.s32.totalorder %s143, %s144
    %p158 = scmp.eq.s32.totalorder %s16, 1
    %p159 = por %p157, %p158
    %p161 = scmp.ne.s32.totalorder %s144, %s160
    %p162 = scmp.eq.s32.totalorder %s16, 0
    %p163 = por %p161, %p162
    %p164 = scmp.le.s32.totalorder 1, %s10
    %p165 = scmp.lt.s32.totalorder %s10, 3
    %p166 = pnand %p164, %p165
    %p167 = pneg %p166
    // Predicated region
    $region9: #{attention_forward.4} parent=5 // pred_check
      _
    $region10: #{attention_forward.4} parent=5 // pred_check_branch
      %169 = sbr.rel (%p166) target = $region12
    $region11: #{attention_forward.4} parent=5 // pred_region
      %s170 = ssub.s32 %s10, 1
    $region12: #{attention_forward.4} parent=5 // pred_fallthru
      _
    %p171 = scmp.lt.s32.totalorder %s10, 2
    // Predicated region
    $region13: #{attention_forward.4} parent=5 // pred_check
      %p172 = pneg %p171
    $region14: #{attention_forward.4} parent=5 // pred_check_branch
      %174 = sbr.rel (%p172) target = $region16
    $region15: #{attention_forward.4} parent=5 // pred_region
      // Predicated region
      $region17: #{attention_forward.4} parent=15 // pred_check
        %p175 = pneg %p44
      $region18: #{attention_forward.4} parent=15 // pred_check_branch
        %177 = sbr.rel (%p175) target = $region20
      $region19: #{attention_forward.4} parent=15 // pred_region
        %p178 = scmp.lt.s32.totalorder %s17, 1
        %s179 = scalar_select %p178, %s17, 1
        %p180 = scmp.lt.s32.totalorder %s18, 0
        %s181 = scalar_select %p180, %s18, 0
        %s182 = sadd.s32 %s181, %s179
        %s183 = smul.addr %s182, 8
        %s184 = scalar_lea.vmem %s0, %s183
      $region20: #{attention_forward.4} parent=15 // pred_fallthru
        _
      // Predicated region
      $region21: #{attention_forward.4} parent=15 // pred_check
        %p185 = pneg %p70
      $region22: #{attention_forward.4} parent=15 // pred_check_branch
        %187 = sbr.rel (%p185) target = $region24
      $region23: #{attention_forward.4} parent=15 // pred_region
        %p188 = scmp.lt.s32.totalorder %s17, 1
        %s189 = scalar_select %p188, %s17, 1
        %s190 = sadd.s32 %s189, 2
        %s191 = smul.addr %s190, 8
        %s192 = scalar_lea.vmem %s1, %s191
      $region24: #{attention_forward.4} parent=15 // pred_fallthru
        _
      // Predicated region
      $region25: #{attention_forward.4} parent=15 // pred_check
        %p193 = pneg %p96
      $region26: #{attention_forward.4} parent=15 // pred_check_branch
        %195 = sbr.rel (%p193) target = $region28
      $region27: #{attention_forward.4} parent=15 // pred_region
        %p196 = scmp.lt.s32.totalorder %s17, 1
        %s197 = scalar_select %p196, %s17, 1
        %s198 = sadd.s32 %s197, 4
        %s199 = smul.addr %s198, 8
        %s200 = scalar_lea.vmem %s2, %s199
      $region28: #{attention_forward.4} parent=15 // pred_fallthru
        _
      // Predicated region
      $region29: #{attention_forward.4} parent=15 // pred_check
        %p201 = pneg %p122
      $region30: #{attention_forward.4} parent=15 // pred_check_branch
        %203 = sbr.rel (%p201) target = $region32
      $region31: #{attention_forward.4} parent=15 // pred_region
        %p204 = scmp.lt.s32.totalorder %s17, 1
        %s205 = scalar_select %p204, %s17, 1
        %s206 = scalar_lea.vmem %s3, %s205
      $region32: #{attention_forward.4} parent=15 // pred_fallthru
        _
    $region16: #{attention_forward.4} parent=5 // pred_fallthru
      _
    %p207 = scmp.le.s32.totalorder 1, %s10
    %p208 = scmp.lt.s32.totalorder %s10, 3
    %p209 = pnand %p207, %p208
    %p210 = pneg %p209
    // Predicated region
    $region33: #{attention_forward.4} parent=5 // pred_check
      _
    $region34: #{attention_forward.4} parent=5 // pred_check_branch
      %212 = sbr.rel (%p209) target = $region36
    $region35: #{attention_forward.4} parent=5 // pred_region
      %s213 = ssub.s32 %s10, 1
      %p214 = scmp.lt.s32.totalorder %s19, 1
      %s215 = scalar_select %p214, %s19, 1
      %p216 = scmp.lt.s32.totalorder %s20, 0
      %s217 = scalar_select %p216, %s20, 0
      %s218 = sadd.s32 %s217, %s215
      %s219 = smul.addr %s218, 8
      %s220 = scalar_lea.vmem %s0, %s219
      %p221 = pneg %p50
      %p222 = pneg %p47
      %p223 = scmp.lt.s32.totalorder %s19, 1
      %s224 = scalar_select %p223, %s19, 1
      %s225 = sadd.s32 %s224, 2
      %s226 = smul.addr %s225, 8
      %s227 = scalar_lea.vmem %s1, %s226
      %p228 = pneg %p76
      %p229 = pneg %p73
      %p230 = scmp.lt.s32.totalorder %s19, 1
      %s231 = scalar_select %p230, %s19, 1
      %s232 = sadd.s32 %s231, 4
      %s233 = smul.addr %s232, 8
      %s234 = scalar_lea.vmem %s2, %s233
      %p235 = pneg %p102
      %p236 = pneg %p99
      %p237 = scmp.lt.s32.totalorder %s19, 1
      %s238 = scalar_select %p237, %s19, 1
      %s239 = scalar_lea.vmem %s3, %s238
      %p240 = pneg %p128
      %p241 = pneg %p125
      %p242 = pneg %p156
      %p243 = pneg %p153
      %p244 = scmp.lt.s32.totalorder %s19, 1
      %s245 = scalar_select %p244, %s19, 1
      %p246 = scmp.lt.s32.totalorder %s20, 0
      %s247 = scalar_select %p246, %s20, 0
      %s248 = sadd.s32 %s247, %s245
      %s249 = smul.addr %s248, 8
      %s250 = scalar_lea.vmem %s4, %s249
      %p251 = scmp.lt.s32.totalorder %s19, 1
      %s252 = scalar_select %p251, %s19, 1
      %p253 = scmp.lt.s32.totalorder %s20, 0
      %s254 = scalar_select %p253, %s20, 0
      %s255 = sadd.s32 %s254, %s252
      %s256 = smul.addr %s255, 8
      %s257 = scalar_lea.vmem %s0, %s256
      %p258 = scmp.lt.s32.totalorder %s19, 1
      %s259 = scalar_select %p258, %s19, 1
      %s260 = sadd.s32 %s259, 2
      %s261 = smul.addr %s260, 8
      %s262 = scalar_lea.vmem %s1, %s261
      %p263 = scmp.lt.s32.totalorder %s19, 1
      %s264 = scalar_select %p263, %s19, 1
      %s265 = sadd.s32 %s264, 4
      %s266 = smul.addr %s265, 8
      %s267 = scalar_lea.vmem %s2, %s266
      %p268 = scmp.lt.s32.totalorder %s19, 1
      %s269 = scalar_select %p268, %s19, 1
      %s270 = scalar_lea.vmem %s3, %s269
      %p271 = scmp.lt.s32.totalorder %s19, 1
      %s272 = scalar_select %p271, %s19, 1
      %p273 = scmp.lt.s32.totalorder %s20, 0
      %s274 = scalar_select %p273, %s20, 0
      %s275 = sadd.s32 %s274, %s272
      %s276 = smul.addr %s275, 8
      %s277 = scalar_lea.vmem %s4, %s276
      %v278 = vld [vmem:[%s257] sm:$0xff]
      %v279 = vld [vmem:[%s262] sm:$0xff]
      %v280 = vld [vmem:[%s267] sm:$0xff]
      %v281 = vld [vmem:[%s270] sm:$0x1]
      %vm282 = vcmask 130048
      %v284 = vsel %vm282, %v278, 0
      %v287 = vsel %vm282, %v279, 0
      %289 = vmatprep.subr.mxu0 0.0
      %290 = vmatpush1.xpose.msra.mxu0 %v287
      %291 = vmatprep.subr.mxu0 0.0
      %292 = vmatpush1.xpose.msra.mxu0 0.0
      %293 = vmatprep.subr.mxu0 0.0
      %294 = vmatpush1.xpose.msra.mxu0 0.0
      %295 = vmatprep.subr.mxu0 0.0
      %296 = vmatpush1.xpose.msra.mxu0 0.0
      %297 = vmatprep.subr.mxu0 0.0
      %298 = vmatpush1.xpose.msra.mxu0 0.0
      %299 = vmatprep.subr.mxu0 0.0
      %300 = vmatpush1.xpose.msra.mxu0 0.0
      %301 = vmatprep.subr.mxu0 0.0
      %302 = vmatpush1.xpose.msra.mxu0 0.0
      %303 = vmatprep.subr.mxu0 0.0
      %304 = vmatpush1.xpose.msra.mxu0 0.0
      %305 = vmatprep.subr.mxu0 0.0
      %306 = vmatpush1.xpose.msra.mxu0 0.0
      %307 = vmatprep.subr.mxu0 0.0
      %308 = vmatpush1.xpose.msra.mxu0 0.0
      %309 = vmatprep.subr.mxu0 0.0
      %310 = vmatpush1.xpose.msra.mxu0 0.0
      %311 = vmatprep.subr.mxu0 0.0
      %312 = vmatpush1.xpose.msra.mxu0 0.0
      %313 = vmatprep.subr.mxu0 0.0
      %314 = vmatpush1.xpose.msra.mxu0 0.0
      %315 = vmatprep.subr.mxu0 0.0
      %316 = vmatpush1.xpose.msra.mxu0 0.0
      %317 = vmatprep.subr.mxu0 0.0
      %318 = vmatpush1.xpose.msra.mxu0 0.0
      %319 = vmatprep.subr.mxu0 0.0
      %320 = vmatpush1.xpose.msra.mxu0 0.0
      %321 = vmatprep.subr.mxu0 0.0
      %322 = vmatpush1.xpose.msra.mxu0 0.0
      %323 = vmatprep.subr.mxu0 0.0
      %324 = vmatpush1.xpose.msra.mxu0 0.0
      %325 = vmatprep.subr.mxu0 0.0
      %326 = vmatpush1.xpose.msra.mxu0 0.0
      %327 = vmatprep.subr.mxu0 0.0
      %328 = vmatpush1.xpose.msra.mxu0 0.0
      %329 = vmatprep.subr.mxu0 0.0
      %330 = vmatpush1.xpose.msra.mxu0 0.0
      %331 = vmatprep.subr.mxu0 0.0
      %332 = vmatpush1.xpose.msra.mxu0 0.0
      %333 = vmatprep.subr.mxu0 0.0
      %334 = vmatpush1.xpose.msra.mxu0 0.0
      %335 = vmatprep.subr.mxu0 0.0
      %336 = vmatpush1.xpose.msra.mxu0 0.0
      %337 = vmatprep.subr.mxu0 0.0
      %338 = vmatpush1.xpose.msra.mxu0 0.0
      %339 = vmatprep.subr.mxu0 0.0
      %340 = vmatpush1.xpose.msra.mxu0 0.0
      %341 = vmatprep.subr.mxu0 0.0
      %342 = vmatpush1.xpose.msra.mxu0 0.0
      %343 = vmatprep.subr.mxu0 0.0
      %344 = vmatpush1.xpose.msra.mxu0 0.0
      %345 = vmatprep.subr.mxu0 0.0
      %346 = vmatpush1.xpose.msra.mxu0 0.0
      %347 = vmatprep.subr.mxu0 0.0
      %348 = vmatpush1.xpose.msra.mxu0 0.0
      %349 = vmatprep.subr.mxu0 0.0
      %350 = vmatpush1.xpose.msra.mxu0 0.0
      %351 = vmatprep.subr.mxu0 0.0
      %352 = vmatpush1.xpose.msra.mxu0 0.0
      %353 = vmatprep.mubr.f32.mxu0 0.0
      %354 = vmatmul.mubr.f32.gmra.mrb[0].mxu0 %v284
      %v355 = vpop.f32.mrb[0].mxu0
      %v356 = vadd.f32 0.0, %v355
      %v357 = vpop.f32.mrb[0].mxu0
      %358 = vdwg.mxu0
      %v359 = vmul.f32 %v356, 0.25
      %v361 = vlaneseq
      %v362 = vshrl.u32 %v361, 7
      %v363 = vsub.s32 0, %v362
      %v364 = vrot.slane %v281, %v363
      %v366 = vadd.f32 %v359, %v364
      %vm367 = vcmask 64512
      %v368 = vsel %vm367, %v366, -inf
      %369 = vmax.xlane.f32.xlu0 %v368
      %v370 = vpop.xlane.xlu0 %369
      %v371 = vsub.f32 %v366, %v370
      %v372 = vmul.f32 %v371, 1.442695
      %v373 = vpow.pop %v372
      %v374 = vsel %vm367, %v373, 0.0
      %375 = vadd.xlane.f32.xlu0 %v374
      %v376 = vpop.xlane.xlu0 %375
      %v377 = vrcp.pop %v376
      %v378 = vmul.f32 %v373, %v377
      %v380 = vsel %vm367, %v378, 0
      %382 = vmatprep.subr.mxu0 0.0
      %383 = vmatpush1.msra.mxu0 %v280
      %384 = vmatprep.subr.mxu0 0.0
      %385 = vmatpush1.msra.mxu0 0.0
      %386 = vmatprep.subr.mxu0 0.0
      %387 = vmatpush1.msra.mxu0 0.0
      %388 = vmatprep.subr.mxu0 0.0
      %389 = vmatpush1.msra.mxu0 0.0
      %390 = vmatprep.subr.mxu0 0.0
      %391 = vmatpush1.msra.mxu0 0.0
      %392 = vmatprep.subr.mxu0 0.0
      %393 = vmatpush1.msra.mxu0 0.0
      %394 = vmatprep.subr.mxu0 0.0
      %395 = vmatpush1.msra.mxu0 0.0
      %396 = vmatprep.subr.mxu0 0.0
      %397 = vmatpush1.msra.mxu0 0.0
      %398 = vmatprep.subr.mxu0 0.0
      %399 = vmatpush1.msra.mxu0 0.0
      %400 = vmatprep.subr.mxu0 0.0
      %401 = vmatpush1.msra.mxu0 0.0
      %402 = vmatprep.subr.mxu0 0.0
      %403 = vmatpush1.msra.mxu0 0.0
      %404 = vmatprep.subr.mxu0 0.0
      %405 = vmatpush1.msra.mxu0 0.0
      %406 = vmatprep.subr.mxu0 0.0
      %407 = vmatpush1.msra.mxu0 0.0
      %408 = vmatprep.subr.mxu0 0.0
      %409 = vmatpush1.msra.mxu0 0.0
      %410 = vmatprep.subr.mxu0 0.0
      %411 = vmatpush1.msra.mxu0 0.0
      %412 = vmatprep.subr.mxu0 0.0
      %413 = vmatpush1.msra.mxu0 0.0
      %414 = vmatprep.subr.mxu0 0.0
      %415 = vmatpush1.msra.mxu0 0.0
      %416 = vmatprep.subr.mxu0 0.0
      %417 = vmatpush1.msra.mxu0 0.0
      %418 = vmatprep.subr.mxu0 0.0
      %419 = vmatpush1.msra.mxu0 0.0
      %420 = vmatprep.subr.mxu0 0.0
      %421 = vmatpush1.msra.mxu0 0.0
      %422 = vmatprep.subr.mxu0 0.0
      %423 = vmatpush1.msra.mxu0 0.0
      %424 = vmatprep.subr.mxu0 0.0
      %425 = vmatpush1.msra.mxu0 0.0
      %426 = vmatprep.subr.mxu0 0.0
      %427 = vmatpush1.msra.mxu0 0.0
      %428 = vmatprep.subr.mxu0 0.0
      %429 = vmatpush1.msra.mxu0 0.0
      %430 = vmatprep.subr.mxu0 0.0
      %431 = vmatpush1.msra.mxu0 0.0
      %432 = vmatprep.subr.mxu0 0.0
      %433 = vmatpush1.msra.mxu0 0.0
      %434 = vmatprep.subr.mxu0 0.0
      %435 = vmatpush1.msra.mxu0 0.0
      %436 = vmatprep.subr.mxu0 0.0
      %437 = vmatpush1.msra.mxu0 0.0
      %438 = vmatprep.subr.mxu0 0.0
      %439 = vmatpush1.msra.mxu0 0.0
      %440 = vmatprep.subr.mxu0 0.0
      %441 = vmatpush1.msra.mxu0 0.0
      %442 = vmatprep.subr.mxu0 0.0
      %443 = vmatpush1.msra.mxu0 0.0
      %444 = vmatprep.subr.mxu0 0.0
      %445 = vmatpush1.msra.mxu0 0.0
      %446 = vmatprep.mubr.f32.mxu0 0.0
      %447 = vmatmul.mubr.f32.gmra.mrb[0].mxu0 %v380
      %v448 = vpop.f32.mrb[0].mxu0
      %v449 = vadd.f32 0.0, %v448
      %v450 = vpop.f32.mrb[0].mxu0
      %451 = vdwg.mxu0
      %452 = vrot.lane.b32.xlu0 %v278, 112
      %v453 = vpop.permute.xlu0 %452
      %454 = vrot.lane.b32.xlu0 %v279, 112
      %v455 = vpop.permute.xlu0 %454
      %v456 = vsel %vm282, %v453, 0
      %v458 = vsel %vm282, %v455, 0
      %460 = vmatprep.subr.mxu0 0.0
      %461 = vmatpush1.xpose.msra.mxu0 %v458
      %462 = vmatprep.subr.mxu0 0.0
      %463 = vmatpush1.xpose.msra.mxu0 0.0
      %464 = vmatprep.subr.mxu0 0.0
      %465 = vmatpush1.xpose.msra.mxu0 0.0
      %466 = vmatprep.subr.mxu0 0.0
      %467 = vmatpush1.xpose.msra.mxu0 0.0
      %468 = vmatprep.subr.mxu0 0.0
      %469 = vmatpush1.xpose.msra.mxu0 0.0
      %470 = vmatprep.subr.mxu0 0.0
      %471 = vmatpush1.xpose.msra.mxu0 0.0
      %472 = vmatprep.subr.mxu0 0.0
      %473 = vmatpush1.xpose.msra.mxu0 0.0
      %474 = vmatprep.subr.mxu0 0.0
      %475 = vmatpush1.xpose.msra.mxu0 0.0
      %476 = vmatprep.subr.mxu0 0.0
      %477 = vmatpush1.xpose.msra.mxu0 0.0
      %478 = vmatprep.subr.mxu0 0.0
      %479 = vmatpush1.xpose.msra.mxu0 0.0
      %480 = vmatprep.subr.mxu0 0.0
      %481 = vmatpush1.xpose.msra.mxu0 0.0
      %482 = vmatprep.subr.mxu0 0.0
      %483 = vmatpush1.xpose.msra.mxu0 0.0
      %484 = vmatprep.subr.mxu0 0.0
      %485 = vmatpush1.xpose.msra.mxu0 0.0
      %486 = vmatprep.subr.mxu0 0.0
      %487 = vmatpush1.xpose.msra.mxu0 0.0
      %488 = vmatprep.subr.mxu0 0.0
      %489 = vmatpush1.xpose.msra.mxu0 0.0
      %490 = vmatprep.subr.mxu0 0.0
      %491 = vmatpush1.xpose.msra.mxu0 0.0
      %492 = vmatprep.subr.mxu0 0.0
      %493 = vmatpush1.xpose.msra.mxu0 0.0
      %494 = vmatprep.subr.mxu0 0.0
      %495 = vmatpush1.xpose.msra.mxu0 0.0
      %496 = vmatprep.subr.mxu0 0.0
      %497 = vmatpush1.xpose.msra.mxu0 0.0
      %498 = vmatprep.subr.mxu0 0.0
      %499 = vmatpush1.xpose.msra.mxu0 0.0
      %500 = vmatprep.subr.mxu0 0.0
      %501 = vmatpush1.xpose.msra.mxu0 0.0
      %502 = vmatprep.subr.mxu0 0.0
      %503 = vmatpush1.xpose.msra.mxu0 0.0
      %504 = vmatprep.subr.mxu0 0.0
      %505 = vmatpush1.xpose.msra.mxu0 0.0
      %506 = vmatprep.subr.mxu0 0.0
      %507 = vmatpush1.xpose.msra.mxu0 0.0
      %508 = vmatprep.subr.mxu0 0.0
      %509 = vmatpush1.xpose.msra.mxu0 0.0
      %510 = vmatprep.subr.mxu0 0.0
      %511 = vmatpush1.xpose.msra.mxu0 0.0
      %512 = vmatprep.subr.mxu0 0.0
      %513 = vmatpush1.xpose.msra.mxu0 0.0
      %514 = vmatprep.subr.mxu0 0.0
      %515 = vmatpush1.xpose.msra.mxu0 0.0
      %516 = vmatprep.subr.mxu0 0.0
      %517 = vmatpush1.xpose.msra.mxu0 0.0
      %518 = vmatprep.subr.mxu0 0.0
      %519 = vmatpush1.xpose.msra.mxu0 0.0
      %520 = vmatprep.subr.mxu0 0.0
      %521 = vmatpush1.xpose.msra.mxu0 0.0
      %522 = vmatprep.subr.mxu0 0.0
      %523 = vmatpush1.xpose.msra.mxu0 0.0
      %524 = vmatprep.mubr.f32.mxu0 0.0
      %525 = vmatmul.mubr.f32.gmra.mrb[0].mxu0 %v456
      %v526 = vpop.f32.mrb[0].mxu0
      %v527 = vadd.f32 0.0, %v526
      %v528 = vpop.f32.mrb[0].mxu0
      %529 = vdwg.mxu0
      %v530 = vmul.f32 %v527, 0.25
      %v531 = vadd.f32 %v530, %v364
      %v532 = vsel %vm367, %v531, -inf
      %533 = vmax.xlane.f32.xlu0 %v532
      %v534 = vpop.xlane.xlu0 %533
      %v535 = vsub.f32 %v531, %v534
      %v536 = vmul.f32 %v535, 1.442695
      %v537 = vpow.pop %v536
      %v538 = vsel %vm367, %v537, 0.0
      %539 = vadd.xlane.f32.xlu0 %v538
      %v540 = vpop.xlane.xlu0 %539
      %v541 = vrcp.pop %v540
      %v542 = vmul.f32 %v537, %v541
      %544 = vrot.lane.b32.xlu0 %v280, 112
      %v545 = vpop.permute.xlu0 %544
      %v548 = vsel %vm367, %v542, 0
      %550 = vmatprep.subr.mxu0 0.0
      %551 = vmatpush1.msra.mxu0 %v545
      %552 = vmatprep.subr.mxu0 0.0
      %553 = vmatpush1.msra.mxu0 0.0
      %554 = vmatprep.subr.mxu0 0.0
      %555 = vmatpush1.msra.mxu0 0.0
      %556 = vmatprep.subr.mxu0 0.0
      %557 = vmatpush1.msra.mxu0 0.0
      %558 = vmatprep.subr.mxu0 0.0
      %559 = vmatpush1.msra.mxu0 0.0
      %560 = vmatprep.subr.mxu0 0.0
      %561 = vmatpush1.msra.mxu0 0.0
      %562 = vmatprep.subr.mxu0 0.0
      %563 = vmatpush1.msra.mxu0 0.0
      %564 = vmatprep.subr.mxu0 0.0
      %565 = vmatpush1.msra.mxu0 0.0
      %566 = vmatprep.subr.mxu0 0.0
      %567 = vmatpush1.msra.mxu0 0.0
      %568 = vmatprep.subr.mxu0 0.0
      %569 = vmatpush1.msra.mxu0 0.0
      %570 = vmatprep.subr.mxu0 0.0
      %571 = vmatpush1.msra.mxu0 0.0
      %572 = vmatprep.subr.mxu0 0.0
      %573 = vmatpush1.msra.mxu0 0.0
      %574 = vmatprep.subr.mxu0 0.0
      %575 = vmatpush1.msra.mxu0 0.0
      %576 = vmatprep.subr.mxu0 0.0
      %577 = vmatpush1.msra.mxu0 0.0
      %578 = vmatprep.subr.mxu0 0.0
      %579 = vmatpush1.msra.mxu0 0.0
      %580 = vmatprep.subr.mxu0 0.0
      %581 = vmatpush1.msra.mxu0 0.0
      %582 = vmatprep.subr.mxu0 0.0
      %583 = vmatpush1.msra.mxu0 0.0
      %584 = vmatprep.subr.mxu0 0.0
      %585 = vmatpush1.msra.mxu0 0.0
      %586 = vmatprep.subr.mxu0 0.0
      %587 = vmatpush1.msra.mxu0 0.0
      %588 = vmatprep.subr.mxu0 0.0
      %589 = vmatpush1.msra.mxu0 0.0
      %590 = vmatprep.subr.mxu0 0.0
      %591 = vmatpush1.msra.mxu0 0.0
      %592 = vmatprep.subr.mxu0 0.0
      %593 = vmatpush1.msra.mxu0 0.0
      %594 = vmatprep.subr.mxu0 0.0
      %595 = vmatpush1.msra.mxu0 0.0
      %596 = vmatprep.subr.mxu0 0.0
      %597 = vmatpush1.msra.mxu0 0.0
      %598 = vmatprep.subr.mxu0 0.0
      %599 = vmatpush1.msra.mxu0 0.0
      %600 = vmatprep.subr.mxu0 0.0
      %601 = vmatpush1.msra.mxu0 0.0
      %602 = vmatprep.subr.mxu0 0.0
      %603 = vmatpush1.msra.mxu0 0.0
      %604 = vmatprep.subr.mxu0 0.0
      %605 = vmatpush1.msra.mxu0 0.0
      %606 = vmatprep.subr.mxu0 0.0
      %607 = vmatpush1.msra.mxu0 0.0
      %608 = vmatprep.subr.mxu0 0.0
      %609 = vmatpush1.msra.mxu0 0.0
      %610 = vmatprep.subr.mxu0 0.0
      %611 = vmatpush1.msra.mxu0 0.0
      %612 = vmatprep.subr.mxu0 0.0
      %613 = vmatpush1.msra.mxu0 0.0
      %614 = vmatprep.mubr.f32.mxu0 0.0
      %615 = vmatmul.mubr.f32.gmra.mrb[0].mxu0 %v548
      %v616 = vpop.f32.mrb[0].mxu0
      %v617 = vadd.f32 0.0, %v616
      %v618 = vpop.f32.mrb[0].mxu0
      %619 = vdwg.mxu0
      %621 = vrot.lane.b32.xlu0 %v617, 16
      %v622 = vpop.permute.xlu0 %621
      %v624 = vsel %vm282, %v449, %v622
      %vm625 = vcmask 261120
      %626 = vst.msk [vmem:[%s277] sm:$0xff] %vm625, %v624
      %p627 = scmp.lt.s32.totalorder %s19, 1
      %s628 = scalar_select %p627, %s19, 1
      %p629 = scmp.lt.s32.totalorder %s20, 0
      %s630 = scalar_select %p629, %s20, 0
      %s631 = sadd.s32 %s630, %s628
      %s632 = smul.addr %s631, 8
      %s633 = scalar_lea.vmem %s4, %s632
      // Predicated region
      $region37: #{attention_forward.4} parent=35 // pred_check
        %p634 = pneg %p153
      $region38: #{attention_forward.4} parent=35 // pred_check_branch
        %636 = sbr.rel (%p634) target = $region40
      $region39: #{attention_forward.4} parent=35 // pred_region
        _
      $region40: #{attention_forward.4} parent=35 // pred_fallthru
        _
    $region36: #{attention_forward.4} parent=5 // pred_fallthru
      _
    %p637 = scmp.le.s32.totalorder 2, %s10
    // Predicated region
    $region41: #{attention_forward.4} parent=5 // pred_check
      %p638 = pneg %p637
    $region42: #{attention_forward.4} parent=5 // pred_check_branch
      %640 = sbr.rel (%p638) target = $region44
    $region43: #{attention_forward.4} parent=5 // pred_region
      %s641 = ssub.s32 %s10, 2
      // Predicated region
      $region45: #{attention_forward.4} parent=43 // pred_check
        %p642 = pneg %p159
      $region46: #{attention_forward.4} parent=43 // pred_check_branch
        %644 = sbr.rel (%p642) target = $region48
      $region47: #{attention_forward.4} parent=43 // pred_region
        %p645 = scmp.lt.s32.totalorder %s21, 1
        %s646 = scalar_select %p645, %s21, 1
        %p647 = scmp.lt.s32.totalorder %s22, 0
        %s648 = scalar_select %p647, %s22, 0
        %s649 = sadd.s32 %s648, %s646
        %s650 = smul.addr %s649, 8
        %s651 = scalar_lea.vmem %s4, %s650
      $region48: #{attention_forward.4} parent=43 // pred_fallthru
        _
    $region44: #{attention_forward.4} parent=5 // pred_fallthru
      _
  $region6: #{attention_forward.4} parent=0 // loop_footer
    %s14 = sadd.s32 1, %s10
  $region7: #{attention_forward.4} parent=0 // loop_footer_branch
    %9 = sbr.rel target = $region3
  $region8: #{attention_forward.4} parent=0 // loop_exit
    _

</llo_original>
